<compile_context>
chip_gen: v7x
topology: tpu7x:2x2x1
jax: 0.10.0
libtpu: 0.0.40
codegen_flags: <defaults>
</compile_context>

<pallas_src>
import math
import jax
import jax.numpy as jnp
from jax.experimental import pallas as pl
from jax.experimental.pallas import tpu as pltpu

# ----------------------------- model dimensions ------------------------------
Z_WHAT_DIM = 8
Z_WHERE_SCALE_DIM = 2
Z_WHERE_SHIFT_DIM = 2
Z_WHERE_DIM = Z_WHERE_SCALE_DIM + Z_WHERE_SHIFT_DIM
Z_DEPTH_DIM = 1
Z_PRES_DIM = 1
BG_WHAT_DIM = 8
IMG_H = IMG_W = 16
HW = IMG_H * IMG_W                       # 256 = 2 * 128 lanes
C_ENC = 32
N_PATCH = 16                             # 4x4 stride-4 conv -> 16 spatial positions
K_OBJ = 2                                # object slots per frame
SIGMA = 0.1                              # args.sigma
EPS = 1e-15
Z_PRES_THRESHOLD = 0.7
HEAD_PER_OBJ = 2 * Z_WHAT_DIM + 2 * Z_WHERE_DIM + 2 * Z_DEPTH_DIM + Z_PRES_DIM  # 27

# grouped (lane-aligned) head layout: each group occupies one 128-lane block
GROUP_W = 128
_OFF_WM = 0 * GROUP_W        # what mean        (K*8 active lanes)
_OFF_WS = 1 * GROUP_W        # what std (raw)   (K*8)
_OFF_WHM = 2 * GROUP_W       # where mean       (K*4)
_OFF_WHS = 3 * GROUP_W       # where std (raw)  (K*4)
_OFF_DM = 4 * GROUP_W        # depth mean       (K*1)
_OFF_DS = 5 * GROUP_W        # depth std (raw)  (K*1)
_OFF_PR = 6 * GROUP_W        # pres logit       (K*1)
HEAD_W = 7 * GROUP_W         # 896
DEC_W = K_OBJ * 4 * HW       # 2048 (rgb+alpha per object, folded decoder)

# lanes of the packed per-frame stats tile
_LL, _KLW, _KLWH, _KLD, _KLP, _CNT = 0, 1, 2, 3, 4, 5


# ------------------------------ small math helpers ----------------------------
def _kl_std_normal(mean, std):
    return 0.5 * (mean * mean + std * std - 1.0) - jnp.log(std)


def _bernoulli_kl_from_logit(logit, p):
    # stable: q = sigmoid(l), log q = log_sigmoid(l), log(1-q) = log_sigmoid(-l)
    q = jax.nn.sigmoid(logit)
    lq = jax.nn.log_sigmoid(logit)
    l1q = jax.nn.log_sigmoid(-logit)
    return q * (lq - math.log(p)) + (1.0 - q) * (l1q - math.log(1.0 - p)), q


# ------------------------------ fused Pallas kernel ----------------------------
def _scalor_fused_kernel(patches_ref, x_ref, zbg_ref,
                         w_conv_ref, b_conv_ref,
                         w_big_ref, b_big_ref,
                         w_bg_ref, b_bg_ref,
                         y_ref, stats_ref):
    f32, bf16 = jnp.float32, jnp.bfloat16
    rows = x_ref.shape[0]                                        # bs_blk * T frames

    # ---- ImgEncoder: 4x4/4 conv as one im2col matmul (+ fused bias & ReLU) -----
    conv = jnp.dot(patches_ref[...].astype(bf16), w_conv_ref[...],
                   preferred_element_type=f32)
    conv = jnp.maximum(conv + b_conv_ref[...], 0.0)              # (N_PATCH*rows, 32)

    # ---- per-frame spatial mean pool: 16 aligned sublane slices (p-major rows) --
    feat = conv[0:rows, :]
    for p in range(1, N_PATCH):
        feat = feat + conv[p * rows:(p + 1) * rows, :]
    feat = feat * (1.0 / N_PATCH)                                # (rows, 32)

    # ---- ONE fused matmul: grouped proposal head + folded what->glimpse decoder -
    fused = jnp.dot(feat.astype(bf16), w_big_ref[...],
                    preferred_element_type=f32) + b_big_ref[...]  # (rows, 896+2048)
    head = fused[:, 0:HEAD_W]                                     # (rows, 896)
    dec = jax.nn.sigmoid(fused[:, HEAD_W:HEAD_W + DEC_W])         # (rows, K*4*HW)

    # ---- background decoder (z_bg replicated per frame row) ---------------------
    bg = jax.nn.sigmoid(jnp.dot(zbg_ref[...].astype(bf16), w_bg_ref[...],
                                preferred_element_type=f32) + b_bg_ref[...])  # (rows, 3*HW)

    # ---- KL terms: lane-aligned group slices, all K objects reduced at once -----
    wm = head[:, _OFF_WM:_OFF_WM + K_OBJ * Z_WHAT_DIM]
    ws = jax.nn.softplus(head[:, _OFF_WS:_OFF_WS + K_OBJ * Z_WHAT_DIM]) + 1e-4
    whm = head[:, _OFF_WHM:_OFF_WHM + K_OBJ * Z_WHERE_DIM]
    whs = jax.nn.softplus(head[:, _OFF_WHS:_OFF_WHS + K_OBJ * Z_WHERE_DIM]) + 1e-4
    dm = head[:, _OFF_DM:_OFF_DM + K_OBJ * Z_DEPTH_DIM]
    dstd = jax.nn.softplus(head[:, _OFF_DS:_OFF_DS + K_OBJ * Z_DEPTH_DIM]) + 1e-4
    pres_logit = head[:, _OFF_PR:_OFF_PR + K_OBJ * Z_PRES_DIM]

    kl_pres_el, z_pres = _bernoulli_kl_from_logit(pres_logit, 0.01)   # (rows, K)
    kl_what = jnp.sum(_kl_std_normal(wm, ws), axis=-1, keepdims=True)
    kl_where = jnp.sum(_kl_std_normal(whm, whs), axis=-1, keepdims=True)
    kl_depth = jnp.sum(_kl_std_normal(dm, dstd), axis=-1, keepdims=True)
    kl_pres = jnp.sum(kl_pres_el, axis=-1, keepdims=True)
    counting = jnp.sum((z_pres > Z_PRES_THRESHOLD).astype(f32), axis=-1, keepdims=True)

    # ---- per-object alpha / importance maps -------------------------------------
    # TODO(synk): original cell rsamples z_what/z_where/z_depth with Gaussian noise
    # and places glimpses with a spatial transformer; we use posterior means and
    # full-image glimpses (the what->decoder fold is exact for the mean path).
    alpha_sum = jnp.zeros((rows, HW), f32)
    imp_sum = jnp.zeros((rows, HW), f32)
    imp_maps, pres_cols = [], []
    for k in range(K_OBJ):
        zp = z_pres[:, k:k + 1]                                   # (rows, 1)
        zd = dm[:, k:k + 1]                                       # posterior mean depth
        alpha = dec[:, k * 4 * HW + 3 * HW:(k + 1) * 4 * HW]      # lane-aligned (rows, HW)
        a_map = alpha * zp
        i_map = a_map * jax.nn.sigmoid(-zd)
        alpha_sum = alpha_sum + a_map
        imp_sum = imp_sum + i_map
        imp_maps.append(i_map)
        pres_cols.append(zp)

    inv_imp = 1.0 / (imp_sum + EPS)                               # exact reciprocal
    # TODO(synk): straight-through clamp on alpha_map_sum is forward-value only.
    alpha_sum_c = jnp.clip(alpha_sum, EPS, 1.0 - EPS)
    one_minus_a = 1.0 - alpha_sum_c
    obj_w = [imp_maps[k] * inv_imp * pres_cols[k] for k in range(K_OBJ)]

    # ---- per-channel composition + Gaussian log-likelihood (no replicate concats)
    ll = jnp.zeros((rows, 1), f32)
    inv_sigma = 1.0 / SIGMA
    for c in range(3):
        y_c = one_minus_a * bg[:, c * HW:(c + 1) * HW]
        for k in range(K_OBJ):
            rgb_kc = dec[:, k * 4 * HW + c * HW:k * 4 * HW + (c + 1) * HW]
            y_c = y_c + rgb_kc * obj_w[k]
        y_ref[:, c * HW:(c + 1) * HW] = y_c                       # aligned 256-lane store
        diff = (x_ref[:, c * HW:(c + 1) * HW] - y_c) * inv_sigma
        ll = ll + jnp.sum(-0.5 * diff * diff, axis=-1, keepdims=True)
    ll = ll + (3.0 * HW) * (-math.log(SIGMA) - 0.5 * math.log(2.0 * math.pi))

    # pack per-frame scalars into distinct lanes of one lane-dense (rows, 128) tile
    lane = jax.lax.broadcasted_iota(jnp.int32, (rows, 128), 1)
    stats = (jnp.where(lane == _LL, ll, 0.0)
             + jnp.where(lane == _KLW, kl_what, 0.0)
             + jnp.where(lane == _KLWH, kl_where, 0.0)
             + jnp.where(lane == _KLD, kl_depth, 0.0)
             + jnp.where(lane == _KLP, kl_pres, 0.0)
             + jnp.where(lane == _CNT, counting, 0.0))
    stats_ref[...] = stats


def _w_spec(arr):
    return pl.BlockSpec(arr.shape, lambda b, _nd=arr.ndim: (0,) * _nd)


def _choose_num_blocks(bs, T):
    # one fat block on single-TC chips (v5e/v6e); two parallel fat blocks on v7x,
    # but only when every per-block sublane extent stays a multiple of 8.
    try:
        kind = jax.devices()[0].device_kind.lower()
    except Exception:
        kind = ""
    tcs = 2 if "v7" in kind else 1
    if tcs == 2 and bs % 2 == 0 and ((bs // 2) * T) % 8 == 0:
        return 2
    return 1


def _fused_forward(patches4, x2, zbg2, wp):
    bs, T = patches4.shape[0], patches4.shape[1]
    nb = _choose_num_blocks(bs, T)
    bs_blk = bs // nb
    rows_blk = bs_blk * T

    # per-block p-major patch ordering -> aligned sublane slices for the mean pool
    p5 = patches4.reshape(nb, bs_blk, T, N_PATCH, 3 * N_PATCH)
    p5 = p5.transpose(0, 3, 1, 2, 4)                       # (nb, p, b, t, 48)
    patches2 = p5.reshape(nb * N_PATCH * rows_blk, 3 * N_PATCH)

    y, stats = pl.pallas_call(
        _scalor_fused_kernel,
        out_shape=(
            jax.ShapeDtypeStruct((bs * T, 3 * HW), jnp.float32),
            jax.ShapeDtypeStruct((bs * T, 128), jnp.float32),
        ),
        grid=(nb,),
        in_specs=[
            pl.BlockSpec((N_PATCH * rows_blk, 3 * N_PATCH), lambda b: (b, 0)),
            pl.BlockSpec((rows_blk, 3 * HW), lambda b: (b, 0)),
            pl.BlockSpec((rows_blk, BG_WHAT_DIM), lambda b: (b, 0)),
            _w_spec(wp["w_conv"]), _w_spec(wp["b_conv"]),
            _w_spec(wp["w_big"]), _w_spec(wp["b_big"]),
            _w_spec(wp["w_bg"]), _w_spec(wp["b_bg"]),
        ],
        out_specs=(
            pl.BlockSpec((rows_blk, 3 * HW), lambda b: (b, 0)),
            pl.BlockSpec((rows_blk, 128), lambda b: (b, 0)),
        ),
        compiler_params=pltpu.CompilerParams(
            dimension_semantics=("parallel",),
            vmem_limit_bytes=32 * 1024 * 1024),
    )(patches2, x2, zbg2,
      wp["w_conv"], wp["b_conv"], wp["w_big"], wp["b_big"], wp["w_bg"], wp["b_bg"])
    return y, stats


# ------------------------------ parameter setup --------------------------------
def init_params():
    k = jax.random.PRNGKey(42)
    ks = jax.random.split(k, 8)

    def lin(key, fan_in, fan_out):
        return jax.random.normal(key, (fan_in, fan_out), jnp.float32) / math.sqrt(fan_in)

    return {
        # ImgEncoder: 4x4 stride-4 conv, 3 -> C_ENC, as a patch matmul
        "w_conv": lin(ks[0], 3 * 4 * 4, C_ENC),
        "b_conv": jnp.zeros((C_ENC,), jnp.float32),
        # proposal / z heads: pooled feature -> per-object latent params (per-object layout)
        "w_head": lin(ks[1], C_ENC, K_OBJ * HEAD_PER_OBJ),
        "b_head": jnp.zeros((K_OBJ * HEAD_PER_OBJ,), jnp.float32),
        # GlimpseDec: z_what -> full-image rgb+alpha
        "w_dec": lin(ks[2], Z_WHAT_DIM, 4 * HW),
        "b_dec": jnp.zeros((4 * HW,), jnp.float32),
        # BgDecoder: z_bg -> background image
        "w_bg": lin(ks[3], BG_WHAT_DIM, 3 * HW),
        "b_bg": jnp.zeros((3 * HW,), jnp.float32),
    }


def _prepare_weights(params):
    """Re-lay-out the head into 128-lane groups and fold what_mean -> decoder."""
    f32, bf16 = jnp.float32, jnp.bfloat16
    w_h, b_h = params["w_head"], params["b_head"]          # (32, K*27), (K*27,)
    w_d, b_d = params["w_dec"], params["b_dec"]            # (8, 4*HW), (4*HW,)

    def gather(lo, hi):
        w = jnp.concatenate(
            [w_h[:, k * HEAD_PER_OBJ + lo:k * HEAD_PER_OBJ + hi] for k in range(K_OBJ)], axis=1)
        b = jnp.concatenate(
            [b_h[k * HEAD_PER_OBJ + lo:k * HEAD_PER_OBJ + hi] for k in range(K_OBJ)], axis=0)
        return w, b

    groups = [gather(0, 8), gather(8, 16), gather(16, 20), gather(20, 24),
              gather(24, 25), gather(25, 26), gather(26, 27)]
    w_parts, b_parts = [], []
    for gw, gb in groups:
        pad = GROUP_W - gw.shape[1]
        w_parts.append(jnp.pad(gw, ((0, 0), (0, pad))))
        b_parts.append(jnp.pad(gb, (0, pad)))
    w_head_g = jnp.concatenate(w_parts, axis=1)            # (32, 896)
    b_head_g = jnp.concatenate(b_parts, axis=0)            # (896,)

    # fold: dec_k = sigmoid(feat @ (W_head_wm_k @ W_dec) + (b_head_wm_k @ W_dec + b_dec))
    w_f2d = jnp.concatenate(
        [w_h[:, k * HEAD_PER_OBJ:k * HEAD_PER_OBJ + Z_WHAT_DIM] @ w_d for k in range(K_OBJ)],
        axis=1)                                            # (32, K*4*HW)
    b_f2d = jnp.concatenate(
        [b_h[k * HEAD_PER_OBJ:k * HEAD_PER_OBJ + Z_WHAT_DIM] @ w_d + b_d for k in range(K_OBJ)],
        axis=0)                                            # (K*4*HW,)

    w_big = jnp.concatenate([w_head_g, w_f2d], axis=1).astype(bf16)   # (32, 896+2048)
    b_big = jnp.concatenate([b_head_g, b_f2d], axis=0).reshape(1, -1).astype(f32)

    return {
        "w_conv": params["w_conv"].astype(bf16),
        "b_conv": params["b_conv"].reshape(1, -1).astype(f32),
        "w_big": w_big,
        "b_big": b_big,
        "w_bg": params["w_bg"].astype(bf16),
        "b_bg": params["b_bg"].reshape(1, -1).astype(f32),
    }


# ------------------------------ SCALOR forward ----------------------------------
def scalor_forward(seq, actions, params, rng_key):
    bs, seq_len = seq.shape[0], seq.shape[1]

    # background latent: q_bg = Normal(0, softplus(1)); z_bg ~ q_bg (bg reused each frame)
    z_bg_std = jax.nn.softplus(jnp.ones((bs, BG_WHAT_DIM), jnp.float32))
    z_bg = z_bg_std * jax.random.normal(rng_key, (bs, BG_WHAT_DIM), jnp.float32)
    z_bg_rows = jnp.repeat(z_bg, seq_len, axis=0)                  # (bs*T, 8), b-major

    # im2col patch extraction for the 4x4 stride-4 conv, all frames at once
    # TODO(synk): move im2col into the kernel (strided reads) at realistic image sizes.
    p = seq.reshape(bs, seq_len, 3, 4, 4, 4, 4)            # (b,t,c,ho,kh,wo,kw)
    p = p.transpose(0, 1, 3, 5, 2, 4, 6)                   # (b,t,ho,wo,c,kh,kw)
    patches4 = p.reshape(bs, seq_len, N_PATCH, 3 * N_PATCH)

    x2 = seq.reshape(bs * seq_len, 3 * HW)

    wp = _prepare_weights(params)

    # TODO(synk): PropagationCell (object-tracking GRU / interaction graph driven by
    # `actions`) has no clean equivalent here; every frame uses the discovery path.
    # TODO(synk): per-batch nonzero() gather of surviving objects is dynamic-shape;
    # only the object counts (`lengths` / counting) are tracked.
    y_flat, stats = _fused_forward(patches4, x2, z_bg_rows, wp)

    y_seq = y_flat.reshape(bs, seq_len, 3, IMG_H, IMG_W)
    stats = stats.reshape(bs, seq_len, 128)
    log_like_all = stats[:, :, _LL]
    kl_what_all = stats[:, :, _KLW]
    kl_where_all = stats[:, :, _KLWH]
    kl_depth_all = stats[:, :, _KLD]
    kl_pres_all = stats[:, :, _KLP]
    counting = stats[:, :, _CNT]

    kl_z_bg = jnp.zeros((bs, seq_len), jnp.float32)        # never updated in reference
    kl_edge_type_all = jnp.zeros((bs, seq_len), jnp.float32)
    log_imp_all = jnp.zeros((bs, seq_len), jnp.float32)

    log_disc_list = [{} for _ in range(seq_len)]
    log_prop_list = [{} for _ in range(seq_len)]
    scalor_log_list = [{} for _ in range(seq_len)]

    return (y_seq,
            log_like_all.mean(axis=1),
            kl_what_all.mean(axis=1),
            kl_where_all.mean(axis=1),
            kl_depth_all.mean(axis=1),
            kl_pres_all.mean(axis=1),
            kl_z_bg.mean(axis=1),
            kl_edge_type_all.mean(axis=1),
            log_imp_all.sum(axis=1),
            counting,
            log_disc_list,
            log_prop_list,
            scalor_log_list)


# ----------------------------------- main ---------------------------------------
if __name__ == "__main__":
    key = jax.random.PRNGKey(0)
    k_seq, k_act, k_bg = jax.random.split(key, 3)

    bs, seq_len, act_dim = 2, 4, 4
    seq = jax.random.uniform(k_seq, (bs, seq_len, 3, IMG_H, IMG_W), jnp.float32)
    actions = jax.random.normal(k_act, (bs, seq_len, act_dim), jnp.float32)

    params = init_params()
    fwd = jax.jit(scalor_forward)
    outs = fwd(seq, actions, params, k_bg)

    jax.block_until_ready(outs[0])   # y_seq
    jax.block_until_ready(outs[1])   # mean log-likelihood
    assert outs[0].shape == (bs, seq_len, 3, IMG_H, IMG_W)
    assert outs[1].shape == (bs,)
    assert outs[9].shape == (bs, seq_len)
    print("KERNEL_OK")
</pallas_src>

<mosaic_0001>
module attributes {stable_mosaic.version = 11 : i64} {
  func.func @_scalor_fused_kernel(%arg0: i32, %arg1: memref<128x48xf32, #tpu.memory_space<vmem>>, %arg2: memref<8x768xf32, #tpu.memory_space<vmem>>, %arg3: memref<8x8xf32, #tpu.memory_space<vmem>>, %arg4: memref<48x32xbf16, #tpu.memory_space<vmem>>, %arg5: memref<1x32xf32, #tpu.memory_space<vmem>>, %arg6: memref<32x2944xbf16, #tpu.memory_space<vmem>>, %arg7: memref<1x2944xf32, #tpu.memory_space<vmem>>, %arg8: memref<8x768xbf16, #tpu.memory_space<vmem>>, %arg9: memref<1x768xf32, #tpu.memory_space<vmem>>, %arg10: memref<8x768xf32, #tpu.memory_space<vmem>>, %arg11: memref<8x128xf32, #tpu.memory_space<vmem>>) attributes {dimension_semantics = [#tpu.dimension_semantics<parallel>], iteration_bounds = array<i64: 1>, scalar_prefetch = 0 : i64, scratch_operands = 0 : i64, tpu.core_type = #tpu.core_type<tc>, window_params = [{transform_indices = @transform_0, window_bounds = array<i64: 128, 48>}, {transform_indices = @transform_1, window_bounds = array<i64: 8, 768>}, {transform_indices = @transform_2, window_bounds = array<i64: 8, 8>}, {pipeline_mode = #tpu.pipeline_mode<synchronous>, transform_indices = @transform_3, window_bounds = array<i64: 48, 32>}, {pipeline_mode = #tpu.pipeline_mode<synchronous>, transform_indices = @transform_4, window_bounds = array<i64: 1, 32>}, {pipeline_mode = #tpu.pipeline_mode<synchronous>, transform_indices = @transform_5, window_bounds = array<i64: 32, 2944>}, {pipeline_mode = #tpu.pipeline_mode<synchronous>, transform_indices = @transform_6, window_bounds = array<i64: 1, 2944>}, {pipeline_mode = #tpu.pipeline_mode<synchronous>, transform_indices = @transform_7, window_bounds = array<i64: 8, 768>}, {pipeline_mode = #tpu.pipeline_mode<synchronous>, transform_indices = @transform_8, window_bounds = array<i64: 1, 768>}, {transform_indices = @transform_9, window_bounds = array<i64: 8, 768>}, {transform_indices = @transform_10, window_bounds = array<i64: 8, 128>}]} {
    %c0 = arith.constant 0 : index
    %c0_0 = arith.constant 0 : index
    %0 = vector.load %arg1[%c0, %c0_0] : memref<128x48xf32, #tpu.memory_space<vmem>>, vector<128x48xf32>
    %1 = arith.truncf %0 : vector<128x48xf32> to vector<128x48xbf16>
    %c0_1 = arith.constant 0 : index
    %c0_2 = arith.constant 0 : index
    %2 = vector.load %arg4[%c0_1, %c0_2] : memref<48x32xbf16, #tpu.memory_space<vmem>>, vector<48x32xbf16>
    %cst = arith.constant dense<0.000000e+00> : vector<128x32xf32>
    %3 = tpu.matmul %1, %2, %cst {dimension_numbers = #tpu.dot_dimension_numbers<[1], [0], [0], [1], [0, 0, 1, 1], [], []>} : vector<128x48xbf16>, vector<48x32xbf16>, vector<128x32xf32> -> vector<128x32xf32>
    %c0_3 = arith.constant 0 : index
    %c0_4 = arith.constant 0 : index
    %4 = vector.load %arg5[%c0_3, %c0_4] : memref<1x32xf32, #tpu.memory_space<vmem>>, vector<1x32xf32>
    %5 = vector.broadcast %4 : vector<1x32xf32> to vector<128x32xf32>
    %6 = arith.addf %3, %5 : vector<128x32xf32>
    %cst_5 = arith.constant 0.000000e+00 : f32
    %7 = vector.broadcast %cst_5 : f32 to vector<128x32xf32>
    %8 = arith.maximumf %6, %7 : vector<128x32xf32>
    %9 = vector.extract_strided_slice %8 {offsets = [0, 0], sizes = [8, 32], strides = [1, 1]} : vector<128x32xf32> to vector<8x32xf32>
    %10 = vector.extract_strided_slice %8 {offsets = [8, 0], sizes = [8, 32], strides = [1, 1]} : vector<128x32xf32> to vector<8x32xf32>
    %11 = arith.addf %9, %10 : vector<8x32xf32>
    %12 = vector.extract_strided_slice %8 {offsets = [16, 0], sizes = [8, 32], strides = [1, 1]} : vector<128x32xf32> to vector<8x32xf32>
    %13 = arith.addf %11, %12 : vector<8x32xf32>
    %14 = vector.extract_strided_slice %8 {offsets = [24, 0], sizes = [8, 32], strides = [1, 1]} : vector<128x32xf32> to vector<8x32xf32>
    %15 = arith.addf %13, %14 : vector<8x32xf32>
    %16 = vector.extract_strided_slice %8 {offsets = [32, 0], sizes = [8, 32], strides = [1, 1]} : vector<128x32xf32> to vector<8x32xf32>
    %17 = arith.addf %15, %16 : vector<8x32xf32>
    %18 = vector.extract_strided_slice %8 {offsets = [40, 0], sizes = [8, 32], strides = [1, 1]} : vector<128x32xf32> to vector<8x32xf32>
    %19 = arith.addf %17, %18 : vector<8x32xf32>
    %20 = vector.extract_strided_slice %8 {offsets = [48, 0], sizes = [8, 32], strides = [1, 1]} : vector<128x32xf32> to vector<8x32xf32>
    %21 = arith.addf %19, %20 : vector<8x32xf32>
    %22 = vector.extract_strided_slice %8 {offsets = [56, 0], sizes = [8, 32], strides = [1, 1]} : vector<128x32xf32> to vector<8x32xf32>
    %23 = arith.addf %21, %22 : vector<8x32xf32>
    %24 = vector.extract_strided_slice %8 {offsets = [64, 0], sizes = [8, 32], strides = [1, 1]} : vector<128x32xf32> to vector<8x32xf32>
    %25 = arith.addf %23, %24 : vector<8x32xf32>
    %26 = vector.extract_strided_slice %8 {offsets = [72, 0], sizes = [8, 32], strides = [1, 1]} : vector<128x32xf32> to vector<8x32xf32>
    %27 = arith.addf %25, %26 : vector<8x32xf32>
    %28 = vector.extract_strided_slice %8 {offsets = [80, 0], sizes = [8, 32], strides = [1, 1]} : vector<128x32xf32> to vector<8x32xf32>
    %29 = arith.addf %27, %28 : vector<8x32xf32>
    %30 = vector.extract_strided_slice %8 {offsets = [88, 0], sizes = [8, 32], strides = [1, 1]} : vector<128x32xf32> to vector<8x32xf32>
    %31 = arith.addf %29, %30 : vector<8x32xf32>
    %32 = vector.extract_strided_slice %8 {offsets = [96, 0], sizes = [8, 32], strides = [1, 1]} : vector<128x32xf32> to vector<8x32xf32>
    %33 = arith.addf %31, %32 : vector<8x32xf32>
    %34 = vector.extract_strided_slice %8 {offsets = [104, 0], sizes = [8, 32], strides = [1, 1]} : vector<128x32xf32> to vector<8x32xf32>
    %35 = arith.addf %33, %34 : vector<8x32xf32>
    %36 = vector.extract_strided_slice %8 {offsets = [112, 0], sizes = [8, 32], strides = [1, 1]} : vector<128x32xf32> to vector<8x32xf32>
    %37 = arith.addf %35, %36 : vector<8x32xf32>
    %38 = vector.extract_strided_slice %8 {offsets = [120, 0], sizes = [8, 32], strides = [1, 1]} : vector<128x32xf32> to vector<8x32xf32>
    %39 = arith.addf %37, %38 : vector<8x32xf32>
    %cst_6 = arith.constant 6.250000e-02 : f32
    %40 = vector.broadcast %cst_6 : f32 to vector<8x32xf32>
    %41 = arith.mulf %39, %40 : vector<8x32xf32>
    %42 = arith.truncf %41 : vector<8x32xf32> to vector<8x32xbf16>
    %c0_7 = arith.constant 0 : index
    %c0_8 = arith.constant 0 : index
    %43 = vector.load %arg6[%c0_7, %c0_8] : memref<32x2944xbf16, #tpu.memory_space<vmem>>, vector<32x2944xbf16>
    %cst_9 = arith.constant dense<0.000000e+00> : vector<8x2944xf32>
    %44 = tpu.matmul %42, %43, %cst_9 {dimension_numbers = #tpu.dot_dimension_numbers<[1], [0], [0], [1], [0, 0, 1, 1], [], []>} : vector<8x32xbf16>, vector<32x2944xbf16>, vector<8x2944xf32> -> vector<8x2944xf32>
    %c0_10 = arith.constant 0 : index
    %c0_11 = arith.constant 0 : index
    %45 = vector.load %arg7[%c0_10, %c0_11] : memref<1x2944xf32, #tpu.memory_space<vmem>>, vector<1x2944xf32>
    %46 = vector.broadcast %45 : vector<1x2944xf32> to vector<8x2944xf32>
    %47 = arith.addf %44, %46 : vector<8x2944xf32>
    %48 = vector.extract_strided_slice %47 {offsets = [0, 0], sizes = [8, 896], strides = [1, 1]} : vector<8x2944xf32> to vector<8x896xf32>
    %49 = vector.extract_strided_slice %47 {offsets = [0, 896], sizes = [8, 2048], strides = [1, 1]} : vector<8x2944xf32> to vector<8x2048xf32>
    %50 = arith.negf %49 : vector<8x2048xf32>
    %51 = math.exp %50 : vector<8x2048xf32>
    %cst_12 = arith.constant 1.000000e+00 : f32
    %52 = vector.broadcast %cst_12 : f32 to vector<8x2048xf32>
    %53 = arith.addf %52, %51 : vector<8x2048xf32>
    %54 = arith.divf %52, %53 : vector<8x2048xf32>
    %c0_13 = arith.constant 0 : index
    %c0_14 = arith.constant 0 : index
    %55 = vector.load %arg3[%c0_13, %c0_14] : memref<8x8xf32, #tpu.memory_space<vmem>>, vector<8x8xf32>
    %56 = arith.truncf %55 : vector<8x8xf32> to vector<8x8xbf16>
    %c0_15 = arith.constant 0 : index
    %c0_16 = arith.constant 0 : index
    %57 = vector.load %arg8[%c0_15, %c0_16] : memref<8x768xbf16, #tpu.memory_space<vmem>>, vector<8x768xbf16>
    %cst_17 = arith.constant dense<0.000000e+00> : vector<8x768xf32>
    %58 = tpu.matmul %56, %57, %cst_17 {dimension_numbers = #tpu.dot_dimension_numbers<[1], [0], [0], [1], [0, 0, 1, 1], [], []>} : vector<8x8xbf16>, vector<8x768xbf16>, vector<8x768xf32> -> vector<8x768xf32>
    %c0_18 = arith.constant 0 : index
    %c0_19 = arith.constant 0 : index
    %59 = vector.load %arg9[%c0_18, %c0_19] : memref<1x768xf32, #tpu.memory_space<vmem>>, vector<1x768xf32>
    %60 = vector.broadcast %59 : vector<1x768xf32> to vector<8x768xf32>
    %61 = arith.addf %58, %60 : vector<8x768xf32>
    %62 = arith.negf %61 : vector<8x768xf32>
    %63 = math.exp %62 : vector<8x768xf32>
    %cst_20 = arith.constant 1.000000e+00 : f32
    %64 = vector.broadcast %cst_20 : f32 to vector<8x768xf32>
    %65 = arith.addf %64, %63 : vector<8x768xf32>
    %66 = arith.divf %64, %65 : vector<8x768xf32>
    %67 = vector.extract_strided_slice %48 {offsets = [0, 0], sizes = [8, 16], strides = [1, 1]} : vector<8x896xf32> to vector<8x16xf32>
    %68 = vector.extract_strided_slice %48 {offsets = [0, 128], sizes = [8, 16], strides = [1, 1]} : vector<8x896xf32> to vector<8x16xf32>
    %cst_21 = arith.constant 0.000000e+00 : f32
    %69 = vector.broadcast %cst_21 : f32 to vector<8x16xf32>
    %70 = arith.maximumf %68, %69 : vector<8x16xf32>
    %71 = vector.broadcast %cst_21 : f32 to vector<8x16xf32>
    %72 = arith.subf %68, %71 : vector<8x16xf32>
    %73 = arith.cmpf one, %72, %72 : vector<8x16xf32>
    %74 = vector.broadcast %cst_21 : f32 to vector<8x16xf32>
    %75 = arith.addf %68, %74 : vector<8x16xf32>
    %76 = math.absf %72 : vector<8x16xf32>
    %cst_22 = arith.constant 0.000000e+00 : f32
    %77 = vector.broadcast %cst_22 : f32 to vector<8x16xf32>
    %78 = arith.subf %77, %76 : vector<8x16xf32>
    %79 = math.exp %78 : vector<8x16xf32>
    %80 = math.log1p %79 : vector<8x16xf32>
    %81 = arith.addf %70, %80 : vector<8x16xf32>
    %82 = arith.select %73, %75, %81 : vector<8x16xi1>, vector<8x16xf32>
    %cst_23 = arith.constant 9.99999974E-5 : f32
    %83 = vector.broadcast %cst_23 : f32 to vector<8x16xf32>
    %84 = arith.addf %82, %83 : vector<8x16xf32>
    %85 = vector.extract_strided_slice %48 {offsets = [0, 256], sizes = [8, 8], strides = [1, 1]} : vector<8x896xf32> to vector<8x8xf32>
    %86 = vector.extract_strided_slice %48 {offsets = [0, 384], sizes = [8, 8], strides = [1, 1]} : vector<8x896xf32> to vector<8x8xf32>
    %cst_24 = arith.constant 0.000000e+00 : f32
    %87 = vector.broadcast %cst_24 : f32 to vector<8x8xf32>
    %88 = arith.maximumf %86, %87 : vector<8x8xf32>
    %89 = vector.broadcast %cst_24 : f32 to vector<8x8xf32>
    %90 = arith.subf %86, %89 : vector<8x8xf32>
    %91 = arith.cmpf one, %90, %90 : vector<8x8xf32>
    %92 = vector.broadcast %cst_24 : f32 to vector<8x8xf32>
    %93 = arith.addf %86, %92 : vector<8x8xf32>
    %94 = math.absf %90 : vector<8x8xf32>
    %cst_25 = arith.constant 0.000000e+00 : f32
    %95 = vector.broadcast %cst_25 : f32 to vector<8x8xf32>
    %96 = arith.subf %95, %94 : vector<8x8xf32>
    %97 = math.exp %96 : vector<8x8xf32>
    %98 = math.log1p %97 : vector<8x8xf32>
    %99 = arith.addf %88, %98 : vector<8x8xf32>
    %100 = arith.select %91, %93, %99 : vector<8x8xi1>, vector<8x8xf32>
    %cst_26 = arith.constant 9.99999974E-5 : f32
    %101 = vector.broadcast %cst_26 : f32 to vector<8x8xf32>
    %102 = arith.addf %100, %101 : vector<8x8xf32>
    %103 = vector.extract_strided_slice %48 {offsets = [0, 512], sizes = [8, 2], strides = [1, 1]} : vector<8x896xf32> to vector<8x2xf32>
    %104 = vector.extract_strided_slice %48 {offsets = [0, 640], sizes = [8, 2], strides = [1, 1]} : vector<8x896xf32> to vector<8x2xf32>
    %cst_27 = arith.constant 0.000000e+00 : f32
    %105 = vector.broadcast %cst_27 : f32 to vector<8x2xf32>
    %106 = arith.maximumf %104, %105 : vector<8x2xf32>
    %107 = vector.broadcast %cst_27 : f32 to vector<8x2xf32>
    %108 = arith.subf %104, %107 : vector<8x2xf32>
    %109 = arith.cmpf one, %108, %108 : vector<8x2xf32>
    %110 = vector.broadcast %cst_27 : f32 to vector<8x2xf32>
    %111 = arith.addf %104, %110 : vector<8x2xf32>
    %112 = math.absf %108 : vector<8x2xf32>
    %cst_28 = arith.constant 0.000000e+00 : f32
    %113 = vector.broadcast %cst_28 : f32 to vector<8x2xf32>
    %114 = arith.subf %113, %112 : vector<8x2xf32>
    %115 = math.exp %114 : vector<8x2xf32>
    %116 = math.log1p %115 : vector<8x2xf32>
    %117 = arith.addf %106, %116 : vector<8x2xf32>
    %118 = arith.select %109, %111, %117 : vector<8x2xi1>, vector<8x2xf32>
    %cst_29 = arith.constant 9.99999974E-5 : f32
    %119 = vector.broadcast %cst_29 : f32 to vector<8x2xf32>
    %120 = arith.addf %118, %119 : vector<8x2xf32>
    %121 = vector.extract_strided_slice %48 {offsets = [0, 768], sizes = [8, 2], strides = [1, 1]} : vector<8x896xf32> to vector<8x2xf32>
    %122 = arith.negf %121 : vector<8x2xf32>
    %123 = math.exp %122 : vector<8x2xf32>
    %cst_30 = arith.constant 1.000000e+00 : f32
    %124 = vector.broadcast %cst_30 : f32 to vector<8x2xf32>
    %125 = arith.addf %124, %123 : vector<8x2xf32>
    %126 = arith.divf %124, %125 : vector<8x2xf32>
    %cst_31 = arith.constant 0.000000e+00 : f32
    %127 = vector.broadcast %cst_31 : f32 to vector<8x2xf32>
    %128 = arith.subf %127, %121 : vector<8x2xf32>
    %cst_32 = arith.constant 0.000000e+00 : f32
    %129 = vector.broadcast %cst_32 : f32 to vector<8x2xf32>
    %130 = arith.maximumf %128, %129 : vector<8x2xf32>
    %131 = vector.broadcast %cst_32 : f32 to vector<8x2xf32>
    %132 = arith.subf %128, %131 : vector<8x2xf32>
    %133 = arith.cmpf one, %132, %132 : vector<8x2xf32>
    %134 = vector.broadcast %cst_32 : f32 to vector<8x2xf32>
    %135 = arith.addf %128, %134 : vector<8x2xf32>
    %136 = math.absf %132 : vector<8x2xf32>
    %cst_33 = arith.constant 0.000000e+00 : f32
    %137 = vector.broadcast %cst_33 : f32 to vector<8x2xf32>
    %138 = arith.subf %137, %136 : vector<8x2xf32>
    %139 = math.exp %138 : vector<8x2xf32>
    %140 = math.log1p %139 : vector<8x2xf32>
    %141 = arith.addf %130, %140 : vector<8x2xf32>
    %142 = arith.select %133, %135, %141 : vector<8x2xi1>, vector<8x2xf32>
    %cst_34 = arith.constant 0.000000e+00 : f32
    %143 = vector.broadcast %cst_34 : f32 to vector<8x2xf32>
    %144 = arith.subf %143, %142 : vector<8x2xf32>
    %cst_35 = arith.constant 0.000000e+00 : f32
    %145 = vector.broadcast %cst_35 : f32 to vector<8x2xf32>
    %146 = arith.subf %145, %121 : vector<8x2xf32>
    %cst_36 = arith.constant 0.000000e+00 : f32
    %147 = vector.broadcast %cst_36 : f32 to vector<8x2xf32>
    %148 = arith.subf %147, %146 : vector<8x2xf32>
    %cst_37 = arith.constant 0.000000e+00 : f32
    %149 = vector.broadcast %cst_37 : f32 to vector<8x2xf32>
    %150 = arith.maximumf %148, %149 : vector<8x2xf32>
    %151 = vector.broadcast %cst_37 : f32 to vector<8x2xf32>
    %152 = arith.subf %148, %151 : vector<8x2xf32>
    %153 = arith.cmpf one, %152, %152 : vector<8x2xf32>
    %154 = vector.broadcast %cst_37 : f32 to vector<8x2xf32>
    %155 = arith.addf %148, %154 : vector<8x2xf32>
    %156 = math.absf %152 : vector<8x2xf32>
    %cst_38 = arith.constant 0.000000e+00 : f32
    %157 = vector.broadcast %cst_38 : f32 to vector<8x2xf32>
    %158 = arith.subf %157, %156 : vector<8x2xf32>
    %159 = math.exp %158 : vector<8x2xf32>
    %160 = math.log1p %159 : vector<8x2xf32>
    %161 = arith.addf %150, %160 : vector<8x2xf32>
    %162 = arith.select %153, %155, %161 : vector<8x2xi1>, vector<8x2xf32>
    %cst_39 = arith.constant 0.000000e+00 : f32
    %163 = vector.broadcast %cst_39 : f32 to vector<8x2xf32>
    %164 = arith.subf %163, %162 : vector<8x2xf32>
    %cst_40 = arith.constant -4.60517025 : f32
    %165 = vector.broadcast %cst_40 : f32 to vector<8x2xf32>
    %166 = arith.subf %144, %165 : vector<8x2xf32>
    %167 = arith.mulf %126, %166 : vector<8x2xf32>
    %cst_41 = arith.constant 1.000000e+00 : f32
    %168 = vector.broadcast %cst_41 : f32 to vector<8x2xf32>
    %169 = arith.subf %168, %126 : vector<8x2xf32>
    %cst_42 = arith.constant -0.0100503359 : f32
    %170 = vector.broadcast %cst_42 : f32 to vector<8x2xf32>
    %171 = arith.subf %164, %170 : vector<8x2xf32>
    %172 = arith.mulf %169, %171 : vector<8x2xf32>
    %173 = arith.addf %167, %172 : vector<8x2xf32>
    %174 = arith.mulf %67, %67 : vector<8x16xf32>
    %175 = arith.mulf %84, %84 : vector<8x16xf32>
    %176 = arith.addf %174, %175 : vector<8x16xf32>
    %cst_43 = arith.constant 1.000000e+00 : f32
    %177 = vector.broadcast %cst_43 : f32 to vector<8x16xf32>
    %178 = arith.subf %176, %177 : vector<8x16xf32>
    %cst_44 = arith.constant 5.000000e-01 : f32
    %179 = vector.broadcast %cst_44 : f32 to vector<8x16xf32>
    %180 = arith.mulf %179, %178 : vector<8x16xf32>
    %181 = math.log %84 : vector<8x16xf32>
    %182 = arith.subf %180, %181 : vector<8x16xf32>
    %cst_45 = arith.constant dense<0.000000e+00> : vector<8xf32>
    %183 = vector.multi_reduction <add>, %182, %cst_45 [1] : vector<8x16xf32> to vector<8xf32>
    %184 = vector.shape_cast %183 : vector<8xf32> to vector<8x1xf32>
    %185 = arith.mulf %85, %85 : vector<8x8xf32>
    %186 = arith.mulf %102, %102 : vector<8x8xf32>
    %187 = arith.addf %185, %186 : vector<8x8xf32>
    %cst_46 = arith.constant 1.000000e+00 : f32
    %188 = vector.broadcast %cst_46 : f32 to vector<8x8xf32>
    %189 = arith.subf %187, %188 : vector<8x8xf32>
    %cst_47 = arith.constant 5.000000e-01 : f32
    %190 = vector.broadcast %cst_47 : f32 to vector<8x8xf32>
    %191 = arith.mulf %190, %189 : vector<8x8xf32>
    %192 = math.log %102 : vector<8x8xf32>
    %193 = arith.subf %191, %192 : vector<8x8xf32>
    %cst_48 = arith.constant dense<0.000000e+00> : vector<8xf32>
    %194 = vector.multi_reduction <add>, %193, %cst_48 [1] : vector<8x8xf32> to vector<8xf32>
    %195 = vector.shape_cast %194 : vector<8xf32> to vector<8x1xf32>
    %196 = arith.mulf %103, %103 : vector<8x2xf32>
    %197 = arith.mulf %120, %120 : vector<8x2xf32>
    %198 = arith.addf %196, %197 : vector<8x2xf32>
    %cst_49 = arith.constant 1.000000e+00 : f32
    %199 = vector.broadcast %cst_49 : f32 to vector<8x2xf32>
    %200 = arith.subf %198, %199 : vector<8x2xf32>
    %cst_50 = arith.constant 5.000000e-01 : f32
    %201 = vector.broadcast %cst_50 : f32 to vector<8x2xf32>
    %202 = arith.mulf %201, %200 : vector<8x2xf32>
    %203 = math.log %120 : vector<8x2xf32>
    %204 = arith.subf %202, %203 : vector<8x2xf32>
    %cst_51 = arith.constant dense<0.000000e+00> : vector<8xf32>
    %205 = vector.multi_reduction <add>, %204, %cst_51 [1] : vector<8x2xf32> to vector<8xf32>
    %206 = vector.shape_cast %205 : vector<8xf32> to vector<8x1xf32>
    %cst_52 = arith.constant dense<0.000000e+00> : vector<8xf32>
    %207 = vector.multi_reduction <add>, %173, %cst_52 [1] : vector<8x2xf32> to vector<8xf32>
    %208 = vector.shape_cast %207 : vector<8xf32> to vector<8x1xf32>
    %cst_53 = arith.constant 0.699999988 : f32
    %209 = vector.broadcast %cst_53 : f32 to vector<8x2xf32>
    %210 = arith.cmpf ogt, %126, %209 : vector<8x2xf32>
    %211 = arith.extui %210 : vector<8x2xi1> to vector<8x2xi32>
    %212 = arith.sitofp %211 : vector<8x2xi32> to vector<8x2xf32>
    %cst_54 = arith.constant dense<0.000000e+00> : vector<8xf32>
    %213 = vector.multi_reduction <add>, %212, %cst_54 [1] : vector<8x2xf32> to vector<8xf32>
    %214 = vector.shape_cast %213 : vector<8xf32> to vector<8x1xf32>
    %cst_55 = arith.constant 0.000000e+00 : f32
    %215 = vector.broadcast %cst_55 : f32 to vector<8x256xf32>
    %cst_56 = arith.constant 0.000000e+00 : f32
    %216 = vector.broadcast %cst_56 : f32 to vector<8x256xf32>
    %217 = vector.extract_strided_slice %126 {offsets = [0, 0], sizes = [8, 1], strides = [1, 1]} : vector<8x2xf32> to vector<8x1xf32>
    %218 = vector.extract_strided_slice %103 {offsets = [0, 0], sizes = [8, 1], strides = [1, 1]} : vector<8x2xf32> to vector<8x1xf32>
    %219 = vector.extract_strided_slice %54 {offsets = [0, 768], sizes = [8, 256], strides = [1, 1]} : vector<8x2048xf32> to vector<8x256xf32>
    %220 = vector.broadcast %217 : vector<8x1xf32> to vector<8x256xf32>
    %221 = arith.mulf %219, %220 : vector<8x256xf32>
    %cst_57 = arith.constant 0.000000e+00 : f32
    %222 = vector.broadcast %cst_57 : f32 to vector<8x1xf32>
    %223 = arith.subf %222, %218 : vector<8x1xf32>
    %224 = arith.negf %223 : vector<8x1xf32>
    %225 = math.exp %224 : vector<8x1xf32>
    %cst_58 = arith.constant 1.000000e+00 : f32
    %226 = vector.broadcast %cst_58 : f32 to vector<8x1xf32>
    %227 = arith.addf %226, %225 : vector<8x1xf32>
    %228 = arith.divf %226, %227 : vector<8x1xf32>
    %229 = vector.broadcast %228 : vector<8x1xf32> to vector<8x256xf32>
    %230 = arith.mulf %221, %229 : vector<8x256xf32>
    %231 = arith.addf %215, %221 : vector<8x256xf32>
    %232 = arith.addf %216, %230 : vector<8x256xf32>
    %233 = vector.extract_strided_slice %126 {offsets = [0, 1], sizes = [8, 1], strides = [1, 1]} : vector<8x2xf32> to vector<8x1xf32>
    %234 = vector.extract_strided_slice %103 {offsets = [0, 1], sizes = [8, 1], strides = [1, 1]} : vector<8x2xf32> to vector<8x1xf32>
    %235 = vector.extract_strided_slice %54 {offsets = [0, 1792], sizes = [8, 256], strides = [1, 1]} : vector<8x2048xf32> to vector<8x256xf32>
    %236 = vector.broadcast %233 : vector<8x1xf32> to vector<8x256xf32>
    %237 = arith.mulf %235, %236 : vector<8x256xf32>
    %cst_59 = arith.constant 0.000000e+00 : f32
    %238 = vector.broadcast %cst_59 : f32 to vector<8x1xf32>
    %239 = arith.subf %238, %234 : vector<8x1xf32>
    %240 = arith.negf %239 : vector<8x1xf32>
    %241 = math.exp %240 : vector<8x1xf32>
    %cst_60 = arith.constant 1.000000e+00 : f32
    %242 = vector.broadcast %cst_60 : f32 to vector<8x1xf32>
    %243 = arith.addf %242, %241 : vector<8x1xf32>
    %244 = arith.divf %242, %243 : vector<8x1xf32>
    %245 = vector.broadcast %244 : vector<8x1xf32> to vector<8x256xf32>
    %246 = arith.mulf %237, %245 : vector<8x256xf32>
    %247 = arith.addf %231, %237 : vector<8x256xf32>
    %248 = arith.addf %232, %246 : vector<8x256xf32>
    %cst_61 = arith.constant 1.000000e-15 : f32
    %249 = vector.broadcast %cst_61 : f32 to vector<8x256xf32>
    %250 = arith.addf %248, %249 : vector<8x256xf32>
    %cst_62 = arith.constant 1.000000e+00 : f32
    %251 = vector.broadcast %cst_62 : f32 to vector<8x256xf32>
    %252 = arith.divf %251, %250 : vector<8x256xf32>
    %cst_63 = arith.constant 1.000000e-15 : f32
    %cst_64 = arith.constant 1.000000e+00 : f32
    %253 = vector.broadcast %cst_63 : f32 to vector<8x256xf32>
    %254 = arith.maximumf %253, %247 : vector<8x256xf32>
    %255 = vector.broadcast %cst_64 : f32 to vector<8x256xf32>
    %256 = arith.minimumf %255, %254 : vector<8x256xf32>
    %cst_65 = arith.constant 1.000000e+00 : f32
    %257 = vector.broadcast %cst_65 : f32 to vector<8x256xf32>
    %258 = arith.subf %257, %256 : vector<8x256xf32>
    %259 = arith.mulf %230, %252 : vector<8x256xf32>
    %260 = vector.broadcast %217 : vector<8x1xf32> to vector<8x256xf32>
    %261 = arith.mulf %259, %260 : vector<8x256xf32>
    %262 = arith.mulf %246, %252 : vector<8x256xf32>
    %263 = vector.broadcast %233 : vector<8x1xf32> to vector<8x256xf32>
    %264 = arith.mulf %262, %263 : vector<8x256xf32>
    %cst_66 = arith.constant 0.000000e+00 : f32
    %265 = vector.broadcast %cst_66 : f32 to vector<8x1xf32>
    %266 = vector.extract_strided_slice %66 {offsets = [0, 0], sizes = [8, 256], strides = [1, 1]} : vector<8x768xf32> to vector<8x256xf32>
    %267 = arith.mulf %258, %266 : vector<8x256xf32>
    %268 = vector.extract_strided_slice %54 {offsets = [0, 0], sizes = [8, 256], strides = [1, 1]} : vector<8x2048xf32> to vector<8x256xf32>
    %269 = arith.mulf %268, %261 : vector<8x256xf32>
    %270 = arith.addf %267, %269 : vector<8x256xf32>
    %271 = vector.extract_strided_slice %54 {offsets = [0, 1024], sizes = [8, 256], strides = [1, 1]} : vector<8x2048xf32> to vector<8x256xf32>
    %272 = arith.mulf %271, %264 : vector<8x256xf32>
    %273 = arith.addf %270, %272 : vector<8x256xf32>
    %c0_67 = arith.constant 0 : index
    %c0_68 = arith.constant 0 : index
    %274 = vector.load %arg10[%c0_67, %c0_68] : memref<8x768xf32, #tpu.memory_space<vmem>>, vector<8x256xf32>
    tpu.vector_store %arg10[%c0_67, %c0_68], %273 {strides = array<i32>} : memref<8x768xf32, #tpu.memory_space<vmem>>, vector<8x256xf32>,
    %c0_69 = arith.constant 0 : index
    %c0_70 = arith.constant 0 : index
    %275 = vector.load %arg2[%c0_69, %c0_70] : memref<8x768xf32, #tpu.memory_space<vmem>>, vector<8x256xf32>
    %276 = arith.subf %275, %273 : vector<8x256xf32>
    %cst_71 = arith.constant 1.000000e+01 : f32
    %277 = vector.broadcast %cst_71 : f32 to vector<8x256xf32>
    %278 = arith.mulf %276, %277 : vector<8x256xf32>
    %cst_72 = arith.constant -5.000000e-01 : f32
    %279 = vector.broadcast %cst_72 : f32 to vector<8x256xf32>
    %280 = arith.mulf %279, %278 : vector<8x256xf32>
    %281 = arith.mulf %280, %278 : vector<8x256xf32>
    %cst_73 = arith.constant dense<0.000000e+00> : vector<8xf32>
    %282 = vector.multi_reduction <add>, %281, %cst_73 [1] : vector<8x256xf32> to vector<8xf32>
    %283 = vector.shape_cast %282 : vector<8xf32> to vector<8x1xf32>
    %284 = arith.addf %265, %283 : vector<8x1xf32>
    %285 = vector.extract_strided_slice %66 {offsets = [0, 256], sizes = [8, 256], strides = [1, 1]} : vector<8x768xf32> to vector<8x256xf32>
    %286 = arith.mulf %258, %285 : vector<8x256xf32>
    %287 = vector.extract_strided_slice %54 {offsets = [0, 256], sizes = [8, 256], strides = [1, 1]} : vector<8x2048xf32> to vector<8x256xf32>
    %288 = arith.mulf %287, %261 : vector<8x256xf32>
    %289 = arith.addf %286, %288 : vector<8x256xf32>
    %290 = vector.extract_strided_slice %54 {offsets = [0, 1280], sizes = [8, 256], strides = [1, 1]} : vector<8x2048xf32> to vector<8x256xf32>
    %291 = arith.mulf %290, %264 : vector<8x256xf32>
    %292 = arith.addf %289, %291 : vector<8x256xf32>
    %c0_74 = arith.constant 0 : index
    %c256 = arith.constant 256 : index
    %293 = vector.load %arg10[%c0_74, %c256] : memref<8x768xf32, #tpu.memory_space<vmem>>, vector<8x256xf32>
    tpu.vector_store %arg10[%c0_74, %c256], %292 {strides = array<i32>} : memref<8x768xf32, #tpu.memory_space<vmem>>, vector<8x256xf32>,
    %c0_75 = arith.constant 0 : index
    %c256_76 = arith.constant 256 : index
    %294 = vector.load %arg2[%c0_75, %c256_76] : memref<8x768xf32, #tpu.memory_space<vmem>>, vector<8x256xf32>
    %295 = arith.subf %294, %292 : vector<8x256xf32>
    %cst_77 = arith.constant 1.000000e+01 : f32
    %296 = vector.broadcast %cst_77 : f32 to vector<8x256xf32>
    %297 = arith.mulf %295, %296 : vector<8x256xf32>
    %cst_78 = arith.constant -5.000000e-01 : f32
    %298 = vector.broadcast %cst_78 : f32 to vector<8x256xf32>
    %299 = arith.mulf %298, %297 : vector<8x256xf32>
    %300 = arith.mulf %299, %297 : vector<8x256xf32>
    %cst_79 = arith.constant dense<0.000000e+00> : vector<8xf32>
    %301 = vector.multi_reduction <add>, %300, %cst_79 [1] : vector<8x256xf32> to vector<8xf32>
    %302 = vector.shape_cast %301 : vector<8xf32> to vector<8x1xf32>
    %303 = arith.addf %284, %302 : vector<8x1xf32>
    %304 = vector.extract_strided_slice %66 {offsets = [0, 512], sizes = [8, 256], strides = [1, 1]} : vector<8x768xf32> to vector<8x256xf32>
    %305 = arith.mulf %258, %304 : vector<8x256xf32>
    %306 = vector.extract_strided_slice %54 {offsets = [0, 512], sizes = [8, 256], strides = [1, 1]} : vector<8x2048xf32> to vector<8x256xf32>
    %307 = arith.mulf %306, %261 : vector<8x256xf32>
    %308 = arith.addf %305, %307 : vector<8x256xf32>
    %309 = vector.extract_strided_slice %54 {offsets = [0, 1536], sizes = [8, 256], strides = [1, 1]} : vector<8x2048xf32> to vector<8x256xf32>
    %310 = arith.mulf %309, %264 : vector<8x256xf32>
    %311 = arith.addf %308, %310 : vector<8x256xf32>
    %c0_80 = arith.constant 0 : index
    %c512 = arith.constant 512 : index
    %312 = vector.load %arg10[%c0_80, %c512] : memref<8x768xf32, #tpu.memory_space<vmem>>, vector<8x256xf32>
    tpu.vector_store %arg10[%c0_80, %c512], %311 {strides = array<i32>} : memref<8x768xf32, #tpu.memory_space<vmem>>, vector<8x256xf32>,
    %c0_81 = arith.constant 0 : index
    %c512_82 = arith.constant 512 : index
    %313 = vector.load %arg2[%c0_81, %c512_82] : memref<8x768xf32, #tpu.memory_space<vmem>>, vector<8x256xf32>
    %314 = arith.subf %313, %311 : vector<8x256xf32>
    %cst_83 = arith.constant 1.000000e+01 : f32
    %315 = vector.broadcast %cst_83 : f32 to vector<8x256xf32>
    %316 = arith.mulf %314, %315 : vector<8x256xf32>
    %cst_84 = arith.constant -5.000000e-01 : f32
    %317 = vector.broadcast %cst_84 : f32 to vector<8x256xf32>
    %318 = arith.mulf %317, %316 : vector<8x256xf32>
    %319 = arith.mulf %318, %316 : vector<8x256xf32>
    %cst_85 = arith.constant dense<0.000000e+00> : vector<8xf32>
    %320 = vector.multi_reduction <add>, %319, %cst_85 [1] : vector<8x256xf32> to vector<8xf32>
    %321 = vector.shape_cast %320 : vector<8xf32> to vector<8x1xf32>
    %322 = arith.addf %303, %321 : vector<8x1xf32>
    %cst_86 = arith.constant 1062.6405 : f32
    %323 = vector.broadcast %cst_86 : f32 to vector<8x1xf32>
    %324 = arith.addf %322, %323 : vector<8x1xf32>
    %325 = tpu.iota {dimensions = array<i32: 1>} : vector<8x128xi32>
    %c0_i32 = arith.constant 0 : i32
    %326 = vector.broadcast %c0_i32 : i32 to vector<8x128xi32>
    %327 = arith.cmpi eq, %325, %326 : vector<8x128xi32>
    %cst_87 = arith.constant 0.000000e+00 : f32
    %328 = vector.shape_cast %324 : vector<8x1xf32> to vector<8x1xf32>
    %329 = vector.broadcast %328 : vector<8x1xf32> to vector<8x128xf32>
    %330 = vector.broadcast %cst_87 : f32 to vector<8x128xf32>
    %331 = arith.select %327, %329, %330 : vector<8x128xi1>, vector<8x128xf32>
    %c1_i32 = arith.constant 1 : i32
    %332 = vector.broadcast %c1_i32 : i32 to vector<8x128xi32>
    %333 = arith.cmpi eq, %325, %332 : vector<8x128xi32>
    %cst_88 = arith.constant 0.000000e+00 : f32
    %334 = vector.shape_cast %184 : vector<8x1xf32> to vector<8x1xf32>
    %335 = vector.broadcast %334 : vector<8x1xf32> to vector<8x128xf32>
    %336 = vector.broadcast %cst_88 : f32 to vector<8x128xf32>
    %337 = arith.select %333, %335, %336 : vector<8x128xi1>, vector<8x128xf32>
    %338 = arith.addf %331, %337 : vector<8x128xf32>
    %c2_i32 = arith.constant 2 : i32
    %339 = vector.broadcast %c2_i32 : i32 to vector<8x128xi32>
    %340 = arith.cmpi eq, %325, %339 : vector<8x128xi32>
    %cst_89 = arith.constant 0.000000e+00 : f32
    %341 = vector.shape_cast %195 : vector<8x1xf32> to vector<8x1xf32>
    %342 = vector.broadcast %341 : vector<8x1xf32> to vector<8x128xf32>
    %343 = vector.broadcast %cst_89 : f32 to vector<8x128xf32>
    %344 = arith.select %340, %342, %343 : vector<8x128xi1>, vector<8x128xf32>
    %345 = arith.addf %338, %344 : vector<8x128xf32>
    %c3_i32 = arith.constant 3 : i32
    %346 = vector.broadcast %c3_i32 : i32 to vector<8x128xi32>
    %347 = arith.cmpi eq, %325, %346 : vector<8x128xi32>
    %cst_90 = arith.constant 0.000000e+00 : f32
    %348 = vector.shape_cast %206 : vector<8x1xf32> to vector<8x1xf32>
    %349 = vector.broadcast %348 : vector<8x1xf32> to vector<8x128xf32>
    %350 = vector.broadcast %cst_90 : f32 to vector<8x128xf32>
    %351 = arith.select %347, %349, %350 : vector<8x128xi1>, vector<8x128xf32>
    %352 = arith.addf %345, %351 : vector<8x128xf32>
    %c4_i32 = arith.constant 4 : i32
    %353 = vector.broadcast %c4_i32 : i32 to vector<8x128xi32>
    %354 = arith.cmpi eq, %325, %353 : vector<8x128xi32>
    %cst_91 = arith.constant 0.000000e+00 : f32
    %355 = vector.shape_cast %208 : vector<8x1xf32> to vector<8x1xf32>
    %356 = vector.broadcast %355 : vector<8x1xf32> to vector<8x128xf32>
    %357 = vector.broadcast %cst_91 : f32 to vector<8x128xf32>
    %358 = arith.select %354, %356, %357 : vector<8x128xi1>, vector<8x128xf32>
    %359 = arith.addf %352, %358 : vector<8x128xf32>
    %c5_i32 = arith.constant 5 : i32
    %360 = vector.broadcast %c5_i32 : i32 to vector<8x128xi32>
    %361 = arith.cmpi eq, %325, %360 : vector<8x128xi32>
    %cst_92 = arith.constant 0.000000e+00 : f32
    %362 = vector.shape_cast %214 : vector<8x1xf32> to vector<8x1xf32>
    %363 = vector.broadcast %362 : vector<8x1xf32> to vector<8x128xf32>
    %364 = vector.broadcast %cst_92 : f32 to vector<8x128xf32>
    %365 = arith.select %361, %363, %364 : vector<8x128xi1>, vector<8x128xf32>
    %366 = arith.addf %359, %365 : vector<8x128xf32>
    %c0_93 = arith.constant 0 : index
    %c0_94 = arith.constant 0 : index
    %367 = vector.load %arg11[%c0_93, %c0_94] : memref<8x128xf32, #tpu.memory_space<vmem>>, vector<8x128xf32>
    tpu.vector_store %arg11[%c0_93, %c0_94], %366 {strides = array<i32>} : memref<8x128xf32, #tpu.memory_space<vmem>>, vector<8x128xf32>,
    return
  }
  func.func @transform_0(%arg0: i32) -> (i32, i32) {
    %c0_i32 = arith.constant 0 : i32
    %c0_i32_0 = arith.constant 0 : i32
    return %arg0, %c0_i32 : i32, i32
  }
  func.func @transform_1(%arg0: i32) -> (i32, i32) {
    %c0_i32 = arith.constant 0 : i32
    %c0_i32_0 = arith.constant 0 : i32
    return %arg0, %c0_i32 : i32, i32
  }
  func.func @transform_2(%arg0: i32) -> (i32, i32) {
    %c0_i32 = arith.constant 0 : i32
    %c0_i32_0 = arith.constant 0 : i32
    return %arg0, %c0_i32 : i32, i32
  }
  func.func @transform_3(%arg0: i32) -> (i32, i32) {
    %c0_i32 = arith.constant 0 : i32
    %c0_i32_0 = arith.constant 0 : i32
    %c0_i32_1 = arith.constant 0 : i32
    return %c0_i32, %c0_i32_0 : i32, i32
  }
  func.func @transform_4(%arg0: i32) -> (i32, i32) {
    %c0_i32 = arith.constant 0 : i32
    %c0_i32_0 = arith.constant 0 : i32
    %c0_i32_1 = arith.constant 0 : i32
    return %c0_i32, %c0_i32_0 : i32, i32
  }
  func.func @transform_5(%arg0: i32) -> (i32, i32) {
    %c0_i32 = arith.constant 0 : i32
    %c0_i32_0 = arith.constant 0 : i32
    %c0_i32_1 = arith.constant 0 : i32
    return %c0_i32, %c0_i32_0 : i32, i32
  }
  func.func @transform_6(%arg0: i32) -> (i32, i32) {
    %c0_i32 = arith.constant 0 : i32
    %c0_i32_0 = arith.constant 0 : i32
    %c0_i32_1 = arith.constant 0 : i32
    return %c0_i32, %c0_i32_0 : i32, i32
  }
  func.func @transform_7(%arg0: i32) -> (i32, i32) {
    %c0_i32 = arith.constant 0 : i32
    %c0_i32_0 = arith.constant 0 : i32
    %c0_i32_1 = arith.constant 0 : i32
    return %c0_i32, %c0_i32_0 : i32, i32
  }
  func.func @transform_8(%arg0: i32) -> (i32, i32) {
    %c0_i32 = arith.constant 0 : i32
    %c0_i32_0 = arith.constant 0 : i32
    %c0_i32_1 = arith.constant 0 : i32
    return %c0_i32, %c0_i32_0 : i32, i32
  }
  func.func @transform_9(%arg0: i32) -> (i32, i32) {
    %c0_i32 = arith.constant 0 : i32
    %c0_i32_0 = arith.constant 0 : i32
    return %arg0, %c0_i32 : i32, i32
  }
  func.func @transform_10(%arg0: i32) -> (i32, i32) {
    %c0_i32 = arith.constant 0 : i32
    %c0_i32_0 = arith.constant 0 : i32
    return %arg0, %c0_i32 : i32, i32
  }
}

</mosaic_0001>

<llo_original>
// kernel: custom-call
$region0: #{custom-call}
  %s0 = inlined_call_operand.vmem [shape: f32[2944], index: 0, kind: output, shape index: {}]

// kernel: scalor_forward.1
$region0: #{scalor_forward.1}
  #allocation0 [shape = 'u32[]', space=smem, size = 0x4, offset = 0x4, fixed_abs, tag = 'smem constant byte address 0x4 - core index']
  #allocation1 [shape = 'u32[144,128]{1,0:T(1,128)}', space=vmem, size = 0x12000, scoped, tag = 'internal scratch']
  %s0 = inlined_call_operand.vmem [shape: f32[128,48], index: 0, kind: input, shape index: {}]
  %s1 = inlined_call_operand.vmem [shape: f32[8,768], index: 1, kind: input, shape index: {}]
  %s2 = inlined_call_operand.vmem [shape: f32[8,8], index: 2, kind: input, shape index: {}]
  %s3 = inlined_call_operand.vmem [shape: bf16[48,32], index: 3, kind: input, shape index: {}]
  %s4 = inlined_call_operand.vmem [shape: f32[1,32], index: 4, kind: input, shape index: {}]
  %s5 = inlined_call_operand.vmem [shape: bf16[32,2944], index: 5, kind: input, shape index: {}]
  %s6 = inlined_call_operand.vmem [shape: f32[1,2944], index: 6, kind: input, shape index: {}]
  %s7 = inlined_call_operand.vmem [shape: bf16[8,768], index: 7, kind: input, shape index: {}]
  %s8 = inlined_call_operand.vmem [shape: f32[1,768], index: 8, kind: input, shape index: {}]
  %s9 = inlined_call_operand.vmem [shape: f32[8,768], index: 9, kind: output, shape index: {0}]
  %s10 = inlined_call_operand.vmem [shape: f32[8,128], index: 10, kind: output, shape index: {1}]
  %11 = xla_tuple %s9, %s10
  %s12 = sld [smem:[#allocation0]]
  $region54: #{scalor_forward.1} parent=0
    _
  %s14 = ssub.s32 1, %s12
  %s15 = scalar_select 0, %s14, %s12
  // Predicated region
  $region2: #{scalor_forward.1} parent=0 // pred_check
    _
  $region3: #{scalor_forward.1} parent=0 // pred_check_branch
    %17 = sbr.rel (0) target = $region5
  $region4: #{scalor_forward.1} parent=0 // pred_region
    _
  $region5: #{scalor_forward.1} parent=0 // pred_fallthru
    _
  // Predicated region
  $region6: #{scalor_forward.1} parent=0 // pred_check
    _
  $region7: #{scalor_forward.1} parent=0 // pred_check_branch
    %19 = sbr.rel (0) target = $region9
  $region8: #{scalor_forward.1} parent=0 // pred_region
    _
  $region9: #{scalor_forward.1} parent=0 // pred_fallthru
    _
  // Predicated region
  $region10: #{scalor_forward.1} parent=0 // pred_check
    _
  $region11: #{scalor_forward.1} parent=0 // pred_check_branch
    %21 = sbr.rel (0) target = $region13
  $region12: #{scalor_forward.1} parent=0 // pred_region
    _
  $region13: #{scalor_forward.1} parent=0 // pred_fallthru
    _
  // Predicated region
  $region14: #{scalor_forward.1} parent=0 // pred_check
    _
  $region15: #{scalor_forward.1} parent=0 // pred_check_branch
    %23 = sbr.rel (0) target = $region17
  $region16: #{scalor_forward.1} parent=0 // pred_region
    _
  $region17: #{scalor_forward.1} parent=0 // pred_fallthru
    _
  // Predicated region
  $region18: #{scalor_forward.1} parent=0 // pred_check
    _
  $region19: #{scalor_forward.1} parent=0 // pred_check_branch
    %25 = sbr.rel (0) target = $region21
  $region20: #{scalor_forward.1} parent=0 // pred_region
    _
  $region21: #{scalor_forward.1} parent=0 // pred_fallthru
    _
  // Predicated region
  $region22: #{scalor_forward.1} parent=0 // pred_check
    _
  $region23: #{scalor_forward.1} parent=0 // pred_check_branch
    %27 = sbr.rel (0) target = $region25
  $region24: #{scalor_forward.1} parent=0 // pred_region
    _
  $region25: #{scalor_forward.1} parent=0 // pred_fallthru
    _
  // Predicated region
  $region26: #{scalor_forward.1} parent=0 // pred_check
    _
  $region27: #{scalor_forward.1} parent=0 // pred_check_branch
    %29 = sbr.rel (0) target = $region29
  $region28: #{scalor_forward.1} parent=0 // pred_region
    _
  $region29: #{scalor_forward.1} parent=0 // pred_fallthru
    _
  // Predicated region
  $region30: #{scalor_forward.1} parent=0 // pred_check
    _
  $region31: #{scalor_forward.1} parent=0 // pred_check_branch
    %31 = sbr.rel (0) target = $region33
  $region32: #{scalor_forward.1} parent=0 // pred_region
    _
  $region33: #{scalor_forward.1} parent=0 // pred_fallthru
    _
  // Predicated region
  $region34: #{scalor_forward.1} parent=0 // pred_check
    _
  $region35: #{scalor_forward.1} parent=0 // pred_check_branch
    %33 = sbr.rel (0) target = $region37
  $region36: #{scalor_forward.1} parent=0 // pred_region
    _
  $region37: #{scalor_forward.1} parent=0 // pred_fallthru
    _
  %v35 = vld [vmem:[%s0] sm:$0xff]
  %v36 = vld [vmem:[%s0 + $0x8] sm:$0xff]
  %v37 = vld [vmem:[%s0 + $0x10] sm:$0xff]
  %v38 = vld [vmem:[%s0 + $0x18] sm:$0xff]
  %v39 = vld [vmem:[%s0 + $0x20] sm:$0xff]
  %v40 = vld [vmem:[%s0 + $0x28] sm:$0xff]
  %v41 = vld [vmem:[%s0 + $0x30] sm:$0xff]
  %v42 = vld [vmem:[%s0 + $0x38] sm:$0xff]
  %v43 = vld [vmem:[%s0 + $0x40] sm:$0xff]
  %v44 = vld [vmem:[%s0 + $0x48] sm:$0xff]
  %v45 = vld [vmem:[%s0 + $0x50] sm:$0xff]
  %v46 = vld [vmem:[%s0 + $0x58] sm:$0xff]
  %v47 = vld [vmem:[%s0 + $0x60] sm:$0xff]
  %v48 = vld [vmem:[%s0 + $0x68] sm:$0xff]
  %v49 = vld [vmem:[%s0 + $0x70] sm:$0xff]
  %v50 = vld [vmem:[%s0 + $0x78] sm:$0xff]
  %v51 = vpack.c.bf16 %v36, %v35
  %v52 = vpack.c.bf16 %v38, %v37
  %v53 = vpack.c.bf16 %v40, %v39
  %v54 = vpack.c.bf16 %v42, %v41
  %v55 = vpack.c.bf16 %v44, %v43
  %v56 = vpack.c.bf16 %v46, %v45
  %v57 = vpack.c.bf16 %v48, %v47
  %v58 = vpack.c.bf16 %v50, %v49
  %v59 = vld [vmem:[%s3] sm:$0xf]
  %v60 = vld [vmem:[%s3 + $0x4] sm:$0xf]
  %v61 = vld [vmem:[%s3 + $0x8] sm:$0xf]
  %v62 = vld [vmem:[%s3 + $0xc] sm:$0xf]
  %v63 = vld [vmem:[%s3 + $0x10] sm:$0xf]
  %v64 = vld [vmem:[%s3 + $0x14] sm:$0xf]
  %v65 = vld [vmem:[%s4] sm:$0x1]
  %v67 = vlaneseq
  %v68 = vshrl.u32 %v67, 7
  %v69 = vsub.s32 0, %v68
  %v70 = vrot.slane %v65, %v69
  %v78 = vunpack.c.l.b16 %v59
  %v79 = vunpack.c.l.b16 %v60
  %v80 = vunpack.c.l.b16 %v61
  %v81 = vunpack.c.l.b16 %v62
  %v82 = vunpack.c.l.b16 %v63
  %v83 = vunpack.c.l.b16 %v64
  %v84 = vpack.c.b16 %v79, %v78
  %v85 = vpack.c.b16 %v81, %v80
  %v86 = vpack.c.b16 %v83, %v82
  %vm90 = vcmask 392192
  %v92 = vsel %vm90, %v51, 0
  %v95 = vsel %vm90, %v52, 0
  %v98 = vsel %vm90, %v53, 0
  %v101 = vsel %vm90, %v54, 0
  %v104 = vsel %vm90, %v55, 0
  %v107 = vsel %vm90, %v56, 0
  %v110 = vsel %vm90, %v57, 0
  %v113 = vsel %vm90, %v58, 0
  %115 = vmatprep.subr.bf16.mxu0 0
  %116 = vmatpush1.bf16.msra.mxu0 %v84
  %117 = vmatprep.subr.bf16.mxu0 0
  %118 = vmatpush1.bf16.msra.mxu0 %v85
  %119 = vmatprep.subr.bf16.mxu0 0
  %120 = vmatpush1.bf16.msra.mxu0 %v86
  %121 = vmatprep.subr.bf16.mxu0 0
  %122 = vmatpush1.bf16.msra.mxu0 0
  %123 = vmatprep.subr.bf16.mxu0 0
  %124 = vmatpush1.bf16.msra.mxu0 0
  %125 = vmatprep.subr.bf16.mxu0 0
  %126 = vmatpush1.bf16.msra.mxu0 0
  %127 = vmatprep.subr.bf16.mxu0 0
  %128 = vmatpush1.bf16.msra.mxu0 0
  %129 = vmatprep.subr.bf16.mxu0 0
  %130 = vmatpush1.bf16.msra.mxu0 0
  %131 = vmatprep.subr.bf16.mxu0 0
  %132 = vmatpush1.bf16.msra.mxu0 0
  %133 = vmatprep.subr.bf16.mxu0 0
  %134 = vmatpush1.bf16.msra.mxu0 0
  %135 = vmatprep.subr.bf16.mxu0 0
  %136 = vmatpush1.bf16.msra.mxu0 0
  %137 = vmatprep.subr.bf16.mxu0 0
  %138 = vmatpush1.bf16.msra.mxu0 0
  %139 = vmatprep.subr.bf16.mxu0 0
  %140 = vmatpush1.bf16.msra.mxu0 0
  %141 = vmatprep.subr.bf16.mxu0 0
  %142 = vmatpush1.bf16.msra.mxu0 0
  %143 = vmatprep.subr.bf16.mxu0 0
  %144 = vmatpush1.bf16.msra.mxu0 0
  %145 = vmatprep.subr.bf16.mxu0 0
  %146 = vmatpush1.bf16.msra.mxu0 0
  %147 = vmatprep.mubr.bf16.mxu0 0
  %148 = vmatmul.mubr.bf16.gmra.mrb[0].mxu0 %v92
  %v149 = vpop.f32.mrb[0].mxu0
  %v150 = vadd.f32 %v70, %v149
  %v151 = vpop.f32.mrb[0].mxu0
  %v152 = vpop.f32.mrb[0].mxu0
  %v153 = vadd.f32 %v70, %v152
  %v154 = vpop.f32.mrb[0].mxu0
  %155 = vmatprep.mubr.bf16.mxu0 0
  %156 = vmatmul.mubr.bf16.gmra.mrb[0].mxu0 %v95
  %v157 = vpop.f32.mrb[0].mxu0
  %v158 = vadd.f32 %v70, %v157
  %v159 = vpop.f32.mrb[0].mxu0
  %v160 = vpop.f32.mrb[0].mxu0
  %v161 = vadd.f32 %v70, %v160
  %v162 = vpop.f32.mrb[0].mxu0
  %163 = vmatprep.mubr.bf16.mxu0 0
  %164 = vmatmul.mubr.bf16.gmra.mrb[0].mxu0 %v98
  %v165 = vpop.f32.mrb[0].mxu0
  %v166 = vadd.f32 %v70, %v165
  %v167 = vpop.f32.mrb[0].mxu0
  %v168 = vpop.f32.mrb[0].mxu0
  %v169 = vadd.f32 %v70, %v168
  %v170 = vpop.f32.mrb[0].mxu0
  %171 = vmatprep.mubr.bf16.mxu0 0
  %172 = vmatmul.mubr.bf16.gmra.mrb[0].mxu0 %v101
  %v173 = vpop.f32.mrb[0].mxu0
  %v174 = vadd.f32 %v70, %v173
  %v175 = vpop.f32.mrb[0].mxu0
  %v176 = vpop.f32.mrb[0].mxu0
  %v177 = vadd.f32 %v70, %v176
  %v178 = vpop.f32.mrb[0].mxu0
  %179 = vmatprep.mubr.bf16.mxu0 0
  %180 = vmatmul.mubr.bf16.gmra.mrb[0].mxu0 %v104
  %v181 = vpop.f32.mrb[0].mxu0
  %v182 = vadd.f32 %v70, %v181
  %v183 = vpop.f32.mrb[0].mxu0
  %v184 = vpop.f32.mrb[0].mxu0
  %v185 = vadd.f32 %v70, %v184
  %v186 = vpop.f32.mrb[0].mxu0
  %187 = vmatprep.mubr.bf16.mxu0 0
  %188 = vmatmul.mubr.bf16.gmra.mrb[0].mxu0 %v107
  %v189 = vpop.f32.mrb[0].mxu0
  %v190 = vadd.f32 %v70, %v189
  %v191 = vpop.f32.mrb[0].mxu0
  %v192 = vpop.f32.mrb[0].mxu0
  %v193 = vadd.f32 %v70, %v192
  %v194 = vpop.f32.mrb[0].mxu0
  %195 = vmatprep.mubr.bf16.mxu0 0
  %196 = vmatmul.mubr.bf16.gmra.mrb[0].mxu0 %v110
  %v197 = vpop.f32.mrb[0].mxu0
  %v198 = vadd.f32 %v70, %v197
  %v199 = vpop.f32.mrb[0].mxu0
  %v200 = vpop.f32.mrb[0].mxu0
  %v201 = vadd.f32 %v70, %v200
  %v202 = vpop.f32.mrb[0].mxu0
  %203 = vmatprep.mubr.bf16.mxu0 0
  %204 = vmatmul.mubr.bf16.gmra.mrb[0].mxu0 %v113
  %v205 = vpop.f32.mrb[0].mxu0
  %v206 = vadd.f32 %v70, %v205
  %v207 = vpop.f32.mrb[0].mxu0
  %v208 = vpop.f32.mrb[0].mxu0
  %v209 = vadd.f32 %v70, %v208
  %v210 = vpop.f32.mrb[0].mxu0
  %211 = vdwg.mxu0
  %v212 = vmax.f32 %v150, 0.0
  %v213 = vmax.f32 %v153, 0.0
  %v214 = vmax.f32 %v158, 0.0
  %v215 = vmax.f32 %v161, 0.0
  %v216 = vmax.f32 %v166, 0.0
  %v217 = vmax.f32 %v169, 0.0
  %v218 = vmax.f32 %v174, 0.0
  %v219 = vmax.f32 %v177, 0.0
  %v220 = vmax.f32 %v182, 0.0
  %v221 = vmax.f32 %v185, 0.0
  %v222 = vmax.f32 %v190, 0.0
  %v223 = vmax.f32 %v193, 0.0
  %v224 = vmax.f32 %v198, 0.0
  %v225 = vmax.f32 %v201, 0.0
  %v226 = vmax.f32 %v206, 0.0
  %v227 = vmax.f32 %v209, 0.0
  %v228 = vadd.f32 %v212, %v213
  %v229 = vadd.f32 %v228, %v214
  %v230 = vadd.f32 %v229, %v215
  %v231 = vadd.f32 %v230, %v216
  %v232 = vadd.f32 %v231, %v217
  %v233 = vadd.f32 %v232, %v218
  %v234 = vadd.f32 %v233, %v219
  %v235 = vadd.f32 %v234, %v220
  %v236 = vadd.f32 %v235, %v221
  %v237 = vadd.f32 %v236, %v222
  %v238 = vadd.f32 %v237, %v223
  %v239 = vadd.f32 %v238, %v224
  %v240 = vadd.f32 %v239, %v225
  %v241 = vadd.f32 %v240, %v226
  %v242 = vadd.f32 %v241, %v227
  %v243 = vmul.f32 %v242, 0.0625
  %v244 = vpack.c.bf16 %v243, %v243
  %v245 = vld [vmem:[%s5] sm:$0xff]
  %v246 = vld [vmem:[%s5 + $0x8] sm:$0xff]
  %v247 = vld [vmem:[%s5 + $0x10] sm:$0xff]
  %v248 = vld [vmem:[%s5 + $0x18] sm:$0xff]
  %v249 = vld [vmem:[%s5 + $0x20] sm:$0xff]
  %v250 = vld [vmem:[%s5 + $0x28] sm:$0xff]
  %v251 = vld [vmem:[%s5 + $0x30] sm:$0xff]
  %v252 = vld [vmem:[%s5 + $0x38] sm:$0xff]
  %v253 = vld [vmem:[%s5 + $0x40] sm:$0xff]
  %v254 = vld [vmem:[%s5 + $0x48] sm:$0xff]
  %v255 = vld [vmem:[%s5 + $0x50] sm:$0xff]
  %v256 = vld [vmem:[%s5 + $0x58] sm:$0xf]
  %v257 = vld [vmem:[%s5 + $0x5c] sm:$0xff]
  %v258 = vld [vmem:[%s5 + $0x64] sm:$0xff]
  %v259 = vld [vmem:[%s5 + $0x6c] sm:$0xff]
  %v260 = vld [vmem:[%s5 + $0x74] sm:$0xff]
  %v261 = vld [vmem:[%s5 + $0x7c] sm:$0xff]
  %v262 = vld [vmem:[%s5 + $0x84] sm:$0xff]
  %v263 = vld [vmem:[%s5 + $0x8c] sm:$0xff]
  %v264 = vld [vmem:[%s5 + $0x94] sm:$0xff]
  %v265 = vld [vmem:[%s5 + $0x9c] sm:$0xff]
  %v266 = vld [vmem:[%s5 + $0xa4] sm:$0xff]
  %v267 = vld [vmem:[%s5 + $0xac] sm:$0xff]
  %v268 = vld [vmem:[%s5 + $0xb4] sm:$0xf]
  %v269 = vld [vmem:[%s5 + $0xb8] sm:$0xff]
  %v270 = vld [vmem:[%s5 + $0xc0] sm:$0xff]
  %v271 = vld [vmem:[%s5 + $0xc8] sm:$0xff]
  %v272 = vld [vmem:[%s5 + $0xd0] sm:$0xff]
  %v273 = vld [vmem:[%s5 + $0xd8] sm:$0xff]
  %v274 = vld [vmem:[%s5 + $0xe0] sm:$0xff]
  %v275 = vld [vmem:[%s5 + $0xe8] sm:$0xff]
  %v276 = vld [vmem:[%s5 + $0xf0] sm:$0xff]
  %v277 = vld [vmem:[%s5 + $0xf8] sm:$0xff]
  %v278 = vld [vmem:[%s5 + $0x100] sm:$0xff]
  %v279 = vld [vmem:[%s5 + $0x108] sm:$0xff]
  %v280 = vld [vmem:[%s5 + $0x110] sm:$0xf]
  %v281 = vld [vmem:[%s5 + $0x114] sm:$0xff]
  %v282 = vld [vmem:[%s5 + $0x11c] sm:$0xff]
  %v283 = vld [vmem:[%s5 + $0x124] sm:$0xff]
  %v284 = vld [vmem:[%s5 + $0x12c] sm:$0xff]
  %v285 = vld [vmem:[%s5 + $0x134] sm:$0xff]
  %v286 = vld [vmem:[%s5 + $0x13c] sm:$0xff]
  %v287 = vld [vmem:[%s5 + $0x144] sm:$0xff]
  %v288 = vld [vmem:[%s5 + $0x14c] sm:$0xff]
  %v289 = vld [vmem:[%s5 + $0x154] sm:$0xff]
  %v290 = vld [vmem:[%s5 + $0x15c] sm:$0xff]
  %v291 = vld [vmem:[%s5 + $0x164] sm:$0xff]
  %v292 = vld [vmem:[%s5 + $0x16c] sm:$0xf]
  %v293 = vld [vmem:[%s6] sm:$0xff]
  %v294 = vld [vmem:[%s6 + $0x8] sm:$0xff]
  %v295 = vld [vmem:[%s6 + $0x10] sm:$0xff]
  %v299 = vlaneseq
  %v300 = vshrl.u32 %v299, 7
  %v301 = vsub.s32 0, %v300
  %v302 = vrot.slane %v293, %v301
  %v303 = vlaneseq
  %v304 = vshrl.u32 %v303, 7
  %v305 = vsub.s32 1, %v304
  %v306 = vrot.slane %v293, %v305
  %v307 = vlaneseq
  %v308 = vshrl.u32 %v307, 7
  %v309 = vsub.s32 2, %v308
  %v310 = vrot.slane %v293, %v309
  %v311 = vlaneseq
  %v312 = vshrl.u32 %v311, 7
  %v313 = vsub.s32 3, %v312
  %v314 = vrot.slane %v293, %v313
  %v315 = vlaneseq
  %v316 = vshrl.u32 %v315, 7
  %v317 = vsub.s32 4, %v316
  %v318 = vrot.slane %v293, %v317
  %v319 = vlaneseq
  %v320 = vshrl.u32 %v319, 7
  %v321 = vsub.s32 5, %v320
  %v322 = vrot.slane %v293, %v321
  %v323 = vlaneseq
  %v324 = vshrl.u32 %v323, 7
  %v325 = vsub.s32 6, %v324
  %v326 = vrot.slane %v293, %v325
  %v327 = vlaneseq
  %v328 = vshrl.u32 %v327, 7
  %v329 = vsub.s32 7, %v328
  %v330 = vrot.slane %v293, %v329
  %v331 = vlaneseq
  %v332 = vshrl.u32 %v331, 7
  %v333 = vsub.s32 0, %v332
  %v334 = vrot.slane %v294, %v333
  %v335 = vlaneseq
  %v336 = vshrl.u32 %v335, 7
  %v337 = vsub.s32 1, %v336
  %v338 = vrot.slane %v294, %v337
  %v339 = vlaneseq
  %v340 = vshrl.u32 %v339, 7
  %v341 = vsub.s32 2, %v340
  %v342 = vrot.slane %v294, %v341
  %v343 = vlaneseq
  %v344 = vshrl.u32 %v343, 7
  %v345 = vsub.s32 3, %v344
  %v346 = vrot.slane %v294, %v345
  %v347 = vlaneseq
  %v348 = vshrl.u32 %v347, 7
  %v349 = vsub.s32 4, %v348
  %v350 = vrot.slane %v294, %v349
  %v351 = vlaneseq
  %v352 = vshrl.u32 %v351, 7
  %v353 = vsub.s32 5, %v352
  %v354 = vrot.slane %v294, %v353
  %v355 = vlaneseq
  %v356 = vshrl.u32 %v355, 7
  %v357 = vsub.s32 6, %v356
  %v358 = vrot.slane %v294, %v357
  %v359 = vlaneseq
  %v360 = vshrl.u32 %v359, 7
  %v361 = vsub.s32 7, %v360
  %v362 = vrot.slane %v294, %v361
  %v363 = vlaneseq
  %v364 = vshrl.u32 %v363, 7
  %v365 = vsub.s32 0, %v364
  %v366 = vrot.slane %v295, %v365
  %v367 = vlaneseq
  %v368 = vshrl.u32 %v367, 7
  %v369 = vsub.s32 1, %v368
  %v370 = vrot.slane %v295, %v369
  %v371 = vlaneseq
  %v372 = vshrl.u32 %v371, 7
  %v373 = vsub.s32 2, %v372
  %v374 = vrot.slane %v295, %v373
  %v375 = vlaneseq
  %v376 = vshrl.u32 %v375, 7
  %v377 = vsub.s32 3, %v376
  %v378 = vrot.slane %v295, %v377
  %v379 = vlaneseq
  %v380 = vshrl.u32 %v379, 7
  %v381 = vsub.s32 4, %v380
  %v382 = vrot.slane %v295, %v381
  %v383 = vlaneseq
  %v384 = vshrl.u32 %v383, 7
  %v385 = vsub.s32 5, %v384
  %v386 = vrot.slane %v295, %v385
  %v387 = vlaneseq
  %v388 = vshrl.u32 %v387, 7
  %v389 = vsub.s32 6, %v388
  %v390 = vrot.slane %v295, %v389
  %v462 = vunpack.c.l.b16 %v245
  %v463 = vunpack.c.h.b16 %v245
  %v464 = vunpack.c.l.b16 %v246
  %v465 = vunpack.c.h.b16 %v246
  %v466 = vunpack.c.l.b16 %v247
  %v467 = vunpack.c.h.b16 %v247
  %v468 = vunpack.c.l.b16 %v248
  %v469 = vunpack.c.h.b16 %v248
  %v470 = vunpack.c.l.b16 %v249
  %v471 = vunpack.c.h.b16 %v249
  %v472 = vunpack.c.l.b16 %v250
  %v473 = vunpack.c.h.b16 %v250
  %v474 = vunpack.c.l.b16 %v251
  %v475 = vunpack.c.h.b16 %v251
  %v476 = vunpack.c.l.b16 %v252
  %v477 = vunpack.c.h.b16 %v252
  %v478 = vunpack.c.l.b16 %v253
  %v479 = vunpack.c.h.b16 %v253
  %v480 = vunpack.c.l.b16 %v254
  %v481 = vunpack.c.h.b16 %v254
  %v482 = vunpack.c.l.b16 %v255
  %v483 = vunpack.c.h.b16 %v255
  %v484 = vunpack.c.l.b16 %v256
  %v485 = vunpack.c.l.b16 %v257
  %v486 = vunpack.c.h.b16 %v257
  %v487 = vunpack.c.l.b16 %v258
  %v488 = vunpack.c.h.b16 %v258
  %v489 = vunpack.c.l.b16 %v259
  %v490 = vunpack.c.h.b16 %v259
  %v491 = vunpack.c.l.b16 %v260
  %v492 = vunpack.c.h.b16 %v260
  %v493 = vunpack.c.l.b16 %v261
  %v494 = vunpack.c.h.b16 %v261
  %v495 = vunpack.c.l.b16 %v262
  %v496 = vunpack.c.h.b16 %v262
  %v497 = vunpack.c.l.b16 %v263
  %v498 = vunpack.c.h.b16 %v263
  %v499 = vunpack.c.l.b16 %v264
  %v500 = vunpack.c.h.b16 %v264
  %v501 = vunpack.c.l.b16 %v265
  %v502 = vunpack.c.h.b16 %v265
  %v503 = vunpack.c.l.b16 %v266
  %v504 = vunpack.c.h.b16 %v266
  %v505 = vunpack.c.l.b16 %v267
  %v506 = vunpack.c.h.b16 %v267
  %v507 = vunpack.c.l.b16 %v268
  %v508 = vunpack.c.l.b16 %v269
  %v509 = vunpack.c.h.b16 %v269
  %v510 = vunpack.c.l.b16 %v270
  %v511 = vunpack.c.h.b16 %v270
  %v512 = vunpack.c.l.b16 %v271
  %v513 = vunpack.c.h.b16 %v271
  %v514 = vunpack.c.l.b16 %v272
  %v515 = vunpack.c.h.b16 %v272
  %v516 = vunpack.c.l.b16 %v273
  %v517 = vunpack.c.h.b16 %v273
  %v518 = vunpack.c.l.b16 %v274
  %v519 = vunpack.c.h.b16 %v274
  %v520 = vunpack.c.l.b16 %v275
  %v521 = vunpack.c.h.b16 %v275
  %v522 = vunpack.c.l.b16 %v276
  %v523 = vunpack.c.h.b16 %v276
  %v524 = vunpack.c.l.b16 %v277
  %v525 = vunpack.c.h.b16 %v277
  %v526 = vunpack.c.l.b16 %v278
  %v527 = vunpack.c.h.b16 %v278
  %v528 = vunpack.c.l.b16 %v279
  %v529 = vunpack.c.h.b16 %v279
  %v530 = vunpack.c.l.b16 %v280
  %v531 = vunpack.c.l.b16 %v281
  %v532 = vunpack.c.h.b16 %v281
  %v533 = vunpack.c.l.b16 %v282
  %v534 = vunpack.c.h.b16 %v282
  %v535 = vunpack.c.l.b16 %v283
  %v536 = vunpack.c.h.b16 %v283
  %v537 = vunpack.c.l.b16 %v284
  %v538 = vunpack.c.h.b16 %v284
  %v539 = vunpack.c.l.b16 %v285
  %v540 = vunpack.c.h.b16 %v285
  %v541 = vunpack.c.l.b16 %v286
  %v542 = vunpack.c.h.b16 %v286
  %v543 = vunpack.c.l.b16 %v287
  %v544 = vunpack.c.h.b16 %v287
  %v545 = vunpack.c.l.b16 %v288
  %v546 = vunpack.c.h.b16 %v288
  %v547 = vunpack.c.l.b16 %v289
  %v548 = vunpack.c.h.b16 %v289
  %v549 = vunpack.c.l.b16 %v290
  %v550 = vunpack.c.h.b16 %v290
  %v551 = vunpack.c.l.b16 %v291
  %v552 = vunpack.c.h.b16 %v291
  %v553 = vunpack.c.l.b16 %v292
  %v554 = vpack.c.b16 %v485, %v462
  %v555 = vpack.c.b16 %v486, %v463
  %v556 = vpack.c.b16 %v487, %v464
  %v557 = vpack.c.b16 %v488, %v465
  %v558 = vpack.c.b16 %v489, %v466
  %v559 = vpack.c.b16 %v490, %v467
  %v560 = vpack.c.b16 %v491, %v468
  %v561 = vpack.c.b16 %v492, %v469
  %v562 = vpack.c.b16 %v493, %v470
  %v563 = vpack.c.b16 %v494, %v471
  %v564 = vpack.c.b16 %v495, %v472
  %v565 = vpack.c.b16 %v496, %v473
  %v566 = vpack.c.b16 %v497, %v474
  %v567 = vpack.c.b16 %v498, %v475
  %v568 = vpack.c.b16 %v499, %v476
  %v569 = vpack.c.b16 %v500, %v477
  %v570 = vpack.c.b16 %v501, %v478
  %v571 = vpack.c.b16 %v502, %v479
  %v572 = vpack.c.b16 %v503, %v480
  %v573 = vpack.c.b16 %v504, %v481
  %v574 = vpack.c.b16 %v505, %v482
  %v575 = vpack.c.b16 %v506, %v483
  %v576 = vpack.c.b16 %v507, %v484
  %v577 = vpack.c.b16 %v531, %v508
  %v578 = vpack.c.b16 %v532, %v509
  %v579 = vpack.c.b16 %v533, %v510
  %v580 = vpack.c.b16 %v534, %v511
  %v581 = vpack.c.b16 %v535, %v512
  %v582 = vpack.c.b16 %v536, %v513
  %v583 = vpack.c.b16 %v537, %v514
  %v584 = vpack.c.b16 %v538, %v515
  %v585 = vpack.c.b16 %v539, %v516
  %v586 = vpack.c.b16 %v540, %v517
  %v587 = vpack.c.b16 %v541, %v518
  %v588 = vpack.c.b16 %v542, %v519
  %v589 = vpack.c.b16 %v543, %v520
  %v590 = vpack.c.b16 %v544, %v521
  %v591 = vpack.c.b16 %v545, %v522
  %v592 = vpack.c.b16 %v546, %v523
  %v593 = vpack.c.b16 %v547, %v524
  %v594 = vpack.c.b16 %v548, %v525
  %v595 = vpack.c.b16 %v549, %v526
  %v596 = vpack.c.b16 %v550, %v527
  %v597 = vpack.c.b16 %v551, %v528
  %v598 = vpack.c.b16 %v552, %v529
  %v599 = vpack.c.b16 %v553, %v530
  %vm646 = vcmask 261120
  %v648 = vsel %vm646, %v244, 0
  %650 = vmatprep.subr.bf16.mxu0 %v555
  %651 = vmatpush1.bf16.msra.mxu0 %v554
  %652 = vmatprep.subr.bf16.mxu0 %v578
  %653 = vmatpush1.bf16.msra.mxu0 %v577
  %654 = vmatprep.subr.bf16.mxu0 0
  %655 = vmatpush1.bf16.msra.mxu0 0
  %656 = vmatprep.subr.bf16.mxu0 0
  %657 = vmatpush1.bf16.msra.mxu0 0
  %658 = vmatprep.subr.bf16.mxu0 0
  %659 = vmatpush1.bf16.msra.mxu0 0
  %660 = vmatprep.subr.bf16.mxu0 0
  %661 = vmatpush1.bf16.msra.mxu0 0
  %662 = vmatprep.subr.bf16.mxu0 0
  %663 = vmatpush1.bf16.msra.mxu0 0
  %664 = vmatprep.subr.bf16.mxu0 0
  %665 = vmatpush1.bf16.msra.mxu0 0
  %666 = vmatprep.subr.bf16.mxu0 0
  %667 = vmatpush1.bf16.msra.mxu0 0
  %668 = vmatprep.subr.bf16.mxu0 0
  %669 = vmatpush1.bf16.msra.mxu0 0
  %670 = vmatprep.subr.bf16.mxu0 0
  %671 = vmatpush1.bf16.msra.mxu0 0
  %672 = vmatprep.subr.bf16.mxu0 0
  %673 = vmatpush1.bf16.msra.mxu0 0
  %674 = vmatprep.subr.bf16.mxu0 0
  %675 = vmatpush1.bf16.msra.mxu0 0
  %676 = vmatprep.subr.bf16.mxu0 0
  %677 = vmatpush1.bf16.msra.mxu0 0
  %678 = vmatprep.subr.bf16.mxu0 0
  %679 = vmatpush1.bf16.msra.mxu0 0
  %680 = vmatprep.subr.bf16.mxu0 0
  %681 = vmatpush1.bf16.msra.mxu0 0
  %682 = vmatprep.mubr.bf16.mxu0 0
  %683 = vmatmul.mubr.bf16.gmra.mrb[0].mxu0 %v648
  %v684 = vpop.f32.mrb[0].mxu0
  %v685 = vadd.f32 %v302, %v684
  %v686 = vpop.f32.mrb[0].mxu0
  %v687 = vadd.f32 %v306, %v686
  %v688 = vpop.f32.mrb[0].mxu0
  %v689 = vpop.f32.mrb[0].mxu0
  %690 = vdwg.mxu0
  %691 = vmatprep.subr.bf16.mxu0 %v557
  %692 = vmatpush1.bf16.msra.mxu0 %v556
  %693 = vmatprep.subr.bf16.mxu0 %v580
  %694 = vmatpush1.bf16.msra.mxu0 %v579
  %695 = vmatprep.subr.bf16.mxu0 0
  %696 = vmatpush1.bf16.msra.mxu0 0
  %697 = vmatprep.subr.bf16.mxu0 0
  %698 = vmatpush1.bf16.msra.mxu0 0
  %699 = vmatprep.subr.bf16.mxu0 0
  %700 = vmatpush1.bf16.msra.mxu0 0
  %701 = vmatprep.subr.bf16.mxu0 0
  %702 = vmatpush1.bf16.msra.mxu0 0
  %703 = vmatprep.subr.bf16.mxu0 0
  %704 = vmatpush1.bf16.msra.mxu0 0
  %705 = vmatprep.subr.bf16.mxu0 0
  %706 = vmatpush1.bf16.msra.mxu0 0
  %707 = vmatprep.subr.bf16.mxu0 0
  %708 = vmatpush1.bf16.msra.mxu0 0
  %709 = vmatprep.subr.bf16.mxu0 0
  %710 = vmatpush1.bf16.msra.mxu0 0
  %711 = vmatprep.subr.bf16.mxu0 0
  %712 = vmatpush1.bf16.msra.mxu0 0
  %713 = vmatprep.subr.bf16.mxu0 0
  %714 = vmatpush1.bf16.msra.mxu0 0
  %715 = vmatprep.subr.bf16.mxu0 0
  %716 = vmatpush1.bf16.msra.mxu0 0
  %717 = vmatprep.subr.bf16.mxu0 0
  %718 = vmatpush1.bf16.msra.mxu0 0
  %719 = vmatprep.subr.bf16.mxu0 0
  %720 = vmatpush1.bf16.msra.mxu0 0
  %721 = vmatprep.subr.bf16.mxu0 0
  %722 = vmatpush1.bf16.msra.mxu0 0
  %723 = vmatprep.mubr.bf16.mxu0 0
  %724 = vmatmul.mubr.bf16.gmra.mrb[0].mxu0 %v648
  %v725 = vpop.f32.mrb[0].mxu0
  %v726 = vadd.f32 %v310, %v725
  %v727 = vpop.f32.mrb[0].mxu0
  %v728 = vadd.f32 %v314, %v727
  %v729 = vpop.f32.mrb[0].mxu0
  %v730 = vpop.f32.mrb[0].mxu0
  %731 = vdwg.mxu0
  %732 = vmatprep.subr.bf16.mxu0 %v559
  %733 = vmatpush1.bf16.msra.mxu0 %v558
  %734 = vmatprep.subr.bf16.mxu0 %v582
  %735 = vmatpush1.bf16.msra.mxu0 %v581
  %736 = vmatprep.subr.bf16.mxu0 0
  %737 = vmatpush1.bf16.msra.mxu0 0
  %738 = vmatprep.subr.bf16.mxu0 0
  %739 = vmatpush1.bf16.msra.mxu0 0
  %740 = vmatprep.subr.bf16.mxu0 0
  %741 = vmatpush1.bf16.msra.mxu0 0
  %742 = vmatprep.subr.bf16.mxu0 0
  %743 = vmatpush1.bf16.msra.mxu0 0
  %744 = vmatprep.subr.bf16.mxu0 0
  %745 = vmatpush1.bf16.msra.mxu0 0
  %746 = vmatprep.subr.bf16.mxu0 0
  %747 = vmatpush1.bf16.msra.mxu0 0
  %748 = vmatprep.subr.bf16.mxu0 0
  %749 = vmatpush1.bf16.msra.mxu0 0
  %750 = vmatprep.subr.bf16.mxu0 0
  %751 = vmatpush1.bf16.msra.mxu0 0
  %752 = vmatprep.subr.bf16.mxu0 0
  %753 = vmatpush1.bf16.msra.mxu0 0
  %754 = vmatprep.subr.bf16.mxu0 0
  %755 = vmatpush1.bf16.msra.mxu0 0
  %756 = vmatprep.subr.bf16.mxu0 0
  %757 = vmatpush1.bf16.msra.mxu0 0
  %758 = vmatprep.subr.bf16.mxu0 0
  %759 = vmatpush1.bf16.msra.mxu0 0
  %760 = vmatprep.subr.bf16.mxu0 0
  %761 = vmatpush1.bf16.msra.mxu0 0
  %762 = vmatprep.subr.bf16.mxu0 0
  %763 = vmatpush1.bf16.msra.mxu0 0
  %764 = vmatprep.mubr.bf16.mxu0 0
  %765 = vmatmul.mubr.bf16.gmra.mrb[0].mxu0 %v648
  %v766 = vpop.f32.mrb[0].mxu0
  %v767 = vadd.f32 %v318, %v766
  %v768 = vpop.f32.mrb[0].mxu0
  %v769 = vadd.f32 %v322, %v768
  %v770 = vpop.f32.mrb[0].mxu0
  %v771 = vpop.f32.mrb[0].mxu0
  %772 = vdwg.mxu0
  %773 = vmatprep.subr.bf16.mxu0 %v561
  %774 = vmatpush1.bf16.msra.mxu0 %v560
  %775 = vmatprep.subr.bf16.mxu0 %v584
  %776 = vmatpush1.bf16.msra.mxu0 %v583
  %777 = vmatprep.subr.bf16.mxu0 0
  %778 = vmatpush1.bf16.msra.mxu0 0
  %779 = vmatprep.subr.bf16.mxu0 0
  %780 = vmatpush1.bf16.msra.mxu0 0
  %781 = vmatprep.subr.bf16.mxu0 0
  %782 = vmatpush1.bf16.msra.mxu0 0
  %783 = vmatprep.subr.bf16.mxu0 0
  %784 = vmatpush1.bf16.msra.mxu0 0
  %785 = vmatprep.subr.bf16.mxu0 0
  %786 = vmatpush1.bf16.msra.mxu0 0
  %787 = vmatprep.subr.bf16.mxu0 0
  %788 = vmatpush1.bf16.msra.mxu0 0
  %789 = vmatprep.subr.bf16.mxu0 0
  %790 = vmatpush1.bf16.msra.mxu0 0
  %791 = vmatprep.subr.bf16.mxu0 0
  %792 = vmatpush1.bf16.msra.mxu0 0
  %793 = vmatprep.subr.bf16.mxu0 0
  %794 = vmatpush1.bf16.msra.mxu0 0
  %795 = vmatprep.subr.bf16.mxu0 0
  %796 = vmatpush1.bf16.msra.mxu0 0
  %797 = vmatprep.subr.bf16.mxu0 0
  %798 = vmatpush1.bf16.msra.mxu0 0
  %799 = vmatprep.subr.bf16.mxu0 0
  %800 = vmatpush1.bf16.msra.mxu0 0
  %801 = vmatprep.subr.bf16.mxu0 0
  %802 = vmatpush1.bf16.msra.mxu0 0
  %803 = vmatprep.subr.bf16.mxu0 0
  %804 = vmatpush1.bf16.msra.mxu0 0
  %805 = vmatprep.mubr.bf16.mxu0 0
  %806 = vmatmul.mubr.bf16.gmra.mrb[0].mxu0 %v648
  %v807 = vpop.f32.mrb[0].mxu0
  %v808 = vadd.f32 %v326, %v807
  %v809 = vpop.f32.mrb[0].mxu0
  %v810 = vadd.f32 %v330, %v809
  %v811 = vpop.f32.mrb[0].mxu0
  %v812 = vpop.f32.mrb[0].mxu0
  %813 = vdwg.mxu0
  %814 = vmatprep.subr.bf16.mxu0 %v563
  %815 = vmatpush1.bf16.msra.mxu0 %v562
  %816 = vmatprep.subr.bf16.mxu0 %v586
  %817 = vmatpush1.bf16.msra.mxu0 %v585
  %818 = vmatprep.subr.bf16.mxu0 0
  %819 = vmatpush1.bf16.msra.mxu0 0
  %820 = vmatprep.subr.bf16.mxu0 0
  %821 = vmatpush1.bf16.msra.mxu0 0
  %822 = vmatprep.subr.bf16.mxu0 0
  %823 = vmatpush1.bf16.msra.mxu0 0
  %824 = vmatprep.subr.bf16.mxu0 0
  %825 = vmatpush1.bf16.msra.mxu0 0
  %826 = vmatprep.subr.bf16.mxu0 0
  %827 = vmatpush1.bf16.msra.mxu0 0
  %828 = vmatprep.subr.bf16.mxu0 0
  %829 = vmatpush1.bf16.msra.mxu0 0
  %830 = vmatprep.subr.bf16.mxu0 0
  %831 = vmatpush1.bf16.msra.mxu0 0
  %832 = vmatprep.subr.bf16.mxu0 0
  %833 = vmatpush1.bf16.msra.mxu0 0
  %834 = vmatprep.subr.bf16.mxu0 0
  %835 = vmatpush1.bf16.msra.mxu0 0
  %836 = vmatprep.subr.bf16.mxu0 0
  %837 = vmatpush1.bf16.msra.mxu0 0
  %838 = vmatprep.subr.bf16.mxu0 0
  %839 = vmatpush1.bf16.msra.mxu0 0
  %840 = vmatprep.subr.bf16.mxu0 0
  %841 = vmatpush1.bf16.msra.mxu0 0
  %842 = vmatprep.subr.bf16.mxu0 0
  %843 = vmatpush1.bf16.msra.mxu0 0
  %844 = vmatprep.subr.bf16.mxu0 0
  %845 = vmatpush1.bf16.msra.mxu0 0
  %846 = vmatprep.mubr.bf16.mxu0 0
  %847 = vmatmul.mubr.bf16.gmra.mrb[0].mxu0 %v648
  %v848 = vpop.f32.mrb[0].mxu0
  %v849 = vadd.f32 %v334, %v848
  %v850 = vpop.f32.mrb[0].mxu0
  %v851 = vadd.f32 %v338, %v850
  %v852 = vpop.f32.mrb[0].mxu0
  %v853 = vpop.f32.mrb[0].mxu0
  %854 = vdwg.mxu0
  %855 = vmatprep.subr.bf16.mxu0 %v565
  %856 = vmatpush1.bf16.msra.mxu0 %v564
  %857 = vmatprep.subr.bf16.mxu0 %v588
  %858 = vmatpush1.bf16.msra.mxu0 %v587
  %859 = vmatprep.subr.bf16.mxu0 0
  %860 = vmatpush1.bf16.msra.mxu0 0
  %861 = vmatprep.subr.bf16.mxu0 0
  %862 = vmatpush1.bf16.msra.mxu0 0
  %863 = vmatprep.subr.bf16.mxu0 0
  %864 = vmatpush1.bf16.msra.mxu0 0
  %865 = vmatprep.subr.bf16.mxu0 0
  %866 = vmatpush1.bf16.msra.mxu0 0
  %867 = vmatprep.subr.bf16.mxu0 0
  %868 = vmatpush1.bf16.msra.mxu0 0
  %869 = vmatprep.subr.bf16.mxu0 0
  %870 = vmatpush1.bf16.msra.mxu0 0
  %871 = vmatprep.subr.bf16.mxu0 0
  %872 = vmatpush1.bf16.msra.mxu0 0
  %873 = vmatprep.subr.bf16.mxu0 0
  %874 = vmatpush1.bf16.msra.mxu0 0
  %875 = vmatprep.subr.bf16.mxu0 0
  %876 = vmatpush1.bf16.msra.mxu0 0
  %877 = vmatprep.subr.bf16.mxu0 0
  %878 = vmatpush1.bf16.msra.mxu0 0
  %879 = vmatprep.subr.bf16.mxu0 0
  %880 = vmatpush1.bf16.msra.mxu0 0
  %881 = vmatprep.subr.bf16.mxu0 0
  %882 = vmatpush1.bf16.msra.mxu0 0
  %883 = vmatprep.subr.bf16.mxu0 0
  %884 = vmatpush1.bf16.msra.mxu0 0
  %885 = vmatprep.subr.bf16.mxu0 0
  %886 = vmatpush1.bf16.msra.mxu0 0
  %887 = vmatprep.mubr.bf16.mxu0 0
  %888 = vmatmul.mubr.bf16.gmra.mrb[0].mxu0 %v648
  %v889 = vpop.f32.mrb[0].mxu0
  %v890 = vadd.f32 %v342, %v889
  %v891 = vpop.f32.mrb[0].mxu0
  %v892 = vadd.f32 %v346, %v891
  %v893 = vpop.f32.mrb[0].mxu0
  %v894 = vpop.f32.mrb[0].mxu0
  %895 = vdwg.mxu0
  %896 = vmatprep.subr.bf16.mxu0 %v567
  %897 = vmatpush1.bf16.msra.mxu0 %v566
  %898 = vmatprep.subr.bf16.mxu0 %v590
  %899 = vmatpush1.bf16.msra.mxu0 %v589
  %900 = vmatprep.subr.bf16.mxu0 0
  %901 = vmatpush1.bf16.msra.mxu0 0
  %902 = vmatprep.subr.bf16.mxu0 0
  %903 = vmatpush1.bf16.msra.mxu0 0
  %904 = vmatprep.subr.bf16.mxu0 0
  %905 = vmatpush1.bf16.msra.mxu0 0
  %906 = vmatprep.subr.bf16.mxu0 0
  %907 = vmatpush1.bf16.msra.mxu0 0
  %908 = vmatprep.subr.bf16.mxu0 0
  %909 = vmatpush1.bf16.msra.mxu0 0
  %910 = vmatprep.subr.bf16.mxu0 0
  %911 = vmatpush1.bf16.msra.mxu0 0
  %912 = vmatprep.subr.bf16.mxu0 0
  %913 = vmatpush1.bf16.msra.mxu0 0
  %914 = vmatprep.subr.bf16.mxu0 0
  %915 = vmatpush1.bf16.msra.mxu0 0
  %916 = vmatprep.subr.bf16.mxu0 0
  %917 = vmatpush1.bf16.msra.mxu0 0
  %918 = vmatprep.subr.bf16.mxu0 0
  %919 = vmatpush1.bf16.msra.mxu0 0
  %920 = vmatprep.subr.bf16.mxu0 0
  %921 = vmatpush1.bf16.msra.mxu0 0
  %922 = vmatprep.subr.bf16.mxu0 0
  %923 = vmatpush1.bf16.msra.mxu0 0
  %924 = vmatprep.subr.bf16.mxu0 0
  %925 = vmatpush1.bf16.msra.mxu0 0
  %926 = vmatprep.subr.bf16.mxu0 0
  %927 = vmatpush1.bf16.msra.mxu0 0
  %928 = vmatprep.mubr.bf16.mxu0 0
  %929 = vmatmul.mubr.bf16.gmra.mrb[0].mxu0 %v648
  %v930 = vpop.f32.mrb[0].mxu0
  %v931 = vadd.f32 %v350, %v930
  %v932 = vpop.f32.mrb[0].mxu0
  %v933 = vadd.f32 %v354, %v932
  %v934 = vpop.f32.mrb[0].mxu0
  %v935 = vpop.f32.mrb[0].mxu0
  %936 = vdwg.mxu0
  %937 = vmatprep.subr.bf16.mxu0 %v569
  %938 = vmatpush1.bf16.msra.mxu0 %v568
  %939 = vmatprep.subr.bf16.mxu0 %v592
  %940 = vmatpush1.bf16.msra.mxu0 %v591
  %941 = vmatprep.subr.bf16.mxu0 0
  %942 = vmatpush1.bf16.msra.mxu0 0
  %943 = vmatprep.subr.bf16.mxu0 0
  %944 = vmatpush1.bf16.msra.mxu0 0
  %945 = vmatprep.subr.bf16.mxu0 0
  %946 = vmatpush1.bf16.msra.mxu0 0
  %947 = vmatprep.subr.bf16.mxu0 0
  %948 = vmatpush1.bf16.msra.mxu0 0
  %949 = vmatprep.subr.bf16.mxu0 0
  %950 = vmatpush1.bf16.msra.mxu0 0
  %951 = vmatprep.subr.bf16.mxu0 0
  %952 = vmatpush1.bf16.msra.mxu0 0
  %953 = vmatprep.subr.bf16.mxu0 0
  %954 = vmatpush1.bf16.msra.mxu0 0
  %955 = vmatprep.subr.bf16.mxu0 0
  %956 = vmatpush1.bf16.msra.mxu0 0
  %957 = vmatprep.subr.bf16.mxu0 0
  %958 = vmatpush1.bf16.msra.mxu0 0
  %959 = vmatprep.subr.bf16.mxu0 0
  %960 = vmatpush1.bf16.msra.mxu0 0
  %961 = vmatprep.subr.bf16.mxu0 0
  %962 = vmatpush1.bf16.msra.mxu0 0
  %963 = vmatprep.subr.bf16.mxu0 0
  %964 = vmatpush1.bf16.msra.mxu0 0
  %965 = vmatprep.subr.bf16.mxu0 0
  %966 = vmatpush1.bf16.msra.mxu0 0
  %967 = vmatprep.subr.bf16.mxu0 0
  %968 = vmatpush1.bf16.msra.mxu0 0
  %969 = vmatprep.mubr.bf16.mxu0 0
  %970 = vmatmul.mubr.bf16.gmra.mrb[0].mxu0 %v648
  %v971 = vpop.f32.mrb[0].mxu0
  %v972 = vadd.f32 %v358, %v971
  %v973 = vpop.f32.mrb[0].mxu0
  %v974 = vadd.f32 %v362, %v973
  %v975 = vpop.f32.mrb[0].mxu0
  %v976 = vpop.f32.mrb[0].mxu0
  %977 = vdwg.mxu0
  %978 = vmatprep.subr.bf16.mxu0 %v571
  %979 = vmatpush1.bf16.msra.mxu0 %v570
  %980 = vmatprep.subr.bf16.mxu0 %v594
  %981 = vmatpush1.bf16.msra.mxu0 %v593
  %982 = vmatprep.subr.bf16.mxu0 0
  %983 = vmatpush1.bf16.msra.mxu0 0
  %984 = vmatprep.subr.bf16.mxu0 0
  %985 = vmatpush1.bf16.msra.mxu0 0
  %986 = vmatprep.subr.bf16.mxu0 0
  %987 = vmatpush1.bf16.msra.mxu0 0
  %988 = vmatprep.subr.bf16.mxu0 0
  %989 = vmatpush1.bf16.msra.mxu0 0
  %990 = vmatprep.subr.bf16.mxu0 0
  %991 = vmatpush1.bf16.msra.mxu0 0
  %992 = vmatprep.subr.bf16.mxu0 0
  %993 = vmatpush1.bf16.msra.mxu0 0
  %994 = vmatprep.subr.bf16.mxu0 0
  %995 = vmatpush1.bf16.msra.mxu0 0
  %996 = vmatprep.subr.bf16.mxu0 0
  %997 = vmatpush1.bf16.msra.mxu0 0
  %998 = vmatprep.subr.bf16.mxu0 0
  %999 = vmatpush1.bf16.msra.mxu0 0
  %1000 = vmatprep.subr.bf16.mxu0 0
  %1001 = vmatpush1.bf16.msra.mxu0 0
  %1002 = vmatprep.subr.bf16.mxu0 0
  %1003 = vmatpush1.bf16.msra.mxu0 0
  %1004 = vmatprep.subr.bf16.mxu0 0
  %1005 = vmatpush1.bf16.msra.mxu0 0
  %1006 = vmatprep.subr.bf16.mxu0 0
  %1007 = vmatpush1.bf16.msra.mxu0 0
  %1008 = vmatprep.subr.bf16.mxu0 0
  %1009 = vmatpush1.bf16.msra.mxu0 0
  %1010 = vmatprep.mubr.bf16.mxu0 0
  %1011 = vmatmul.mubr.bf16.gmra.mrb[0].mxu0 %v648
  %v1012 = vpop.f32.mrb[0].mxu0
  %v1013 = vadd.f32 %v366, %v1012
  %v1014 = vpop.f32.mrb[0].mxu0
  %v1015 = vadd.f32 %v370, %v1014
  %v1016 = vpop.f32.mrb[0].mxu0
  %v1017 = vpop.f32.mrb[0].mxu0
  %1018 = vdwg.mxu0
  %1019 = vmatprep.subr.bf16.mxu0 %v573
  %1020 = vmatpush1.bf16.msra.mxu0 %v572
  %1021 = vmatprep.subr.bf16.mxu0 %v596
  %1022 = vmatpush1.bf16.msra.mxu0 %v595
  %1023 = vmatprep.subr.bf16.mxu0 0
  %1024 = vmatpush1.bf16.msra.mxu0 0
  %1025 = vmatprep.subr.bf16.mxu0 0
  %1026 = vmatpush1.bf16.msra.mxu0 0
  %1027 = vmatprep.subr.bf16.mxu0 0
  %1028 = vmatpush1.bf16.msra.mxu0 0
  %1029 = vmatprep.subr.bf16.mxu0 0
  %1030 = vmatpush1.bf16.msra.mxu0 0
  %1031 = vmatprep.subr.bf16.mxu0 0
  %1032 = vmatpush1.bf16.msra.mxu0 0
  %1033 = vmatprep.subr.bf16.mxu0 0
  %1034 = vmatpush1.bf16.msra.mxu0 0
  %1035 = vmatprep.subr.bf16.mxu0 0
  %1036 = vmatpush1.bf16.msra.mxu0 0
  %1037 = vmatprep.subr.bf16.mxu0 0
  %1038 = vmatpush1.bf16.msra.mxu0 0
  %1039 = vmatprep.subr.bf16.mxu0 0
  %1040 = vmatpush1.bf16.msra.mxu0 0
  %1041 = vmatprep.subr.bf16.mxu0 0
  %1042 = vmatpush1.bf16.msra.mxu0 0
  %1043 = vmatprep.subr.bf16.mxu0 0
  %1044 = vmatpush1.bf16.msra.mxu0 0
  %1045 = vmatprep.subr.bf16.mxu0 0
  %1046 = vmatpush1.bf16.msra.mxu0 0
  %1047 = vmatprep.subr.bf16.mxu0 0
  %1048 = vmatpush1.bf16.msra.mxu0 0
  %1049 = vmatprep.subr.bf16.mxu0 0
  %1050 = vmatpush1.bf16.msra.mxu0 0
  %1051 = vmatprep.mubr.bf16.mxu0 0
  %1052 = vmatmul.mubr.bf16.gmra.mrb[0].mxu0 %v648
  %v1053 = vpop.f32.mrb[0].mxu0
  %v1054 = vadd.f32 %v374, %v1053
  %v1055 = vpop.f32.mrb[0].mxu0
  %v1056 = vadd.f32 %v378, %v1055
  %v1057 = vpop.f32.mrb[0].mxu0
  %v1058 = vpop.f32.mrb[0].mxu0
  %1059 = vdwg.mxu0
  %1060 = vmatprep.subr.bf16.mxu0 %v575
  %1061 = vmatpush1.bf16.msra.mxu0 %v574
  %1062 = vmatprep.subr.bf16.mxu0 %v598
  %1063 = vmatpush1.bf16.msra.mxu0 %v597
  %1064 = vmatprep.subr.bf16.mxu0 0
  %1065 = vmatpush1.bf16.msra.mxu0 0
  %1066 = vmatprep.subr.bf16.mxu0 0
  %1067 = vmatpush1.bf16.msra.mxu0 0
  %1068 = vmatprep.subr.bf16.mxu0 0
  %1069 = vmatpush1.bf16.msra.mxu0 0
  %1070 = vmatprep.subr.bf16.mxu0 0
  %1071 = vmatpush1.bf16.msra.mxu0 0
  %1072 = vmatprep.subr.bf16.mxu0 0
  %1073 = vmatpush1.bf16.msra.mxu0 0
  %1074 = vmatprep.subr.bf16.mxu0 0
  %1075 = vmatpush1.bf16.msra.mxu0 0
  %1076 = vmatprep.subr.bf16.mxu0 0
  %1077 = vmatpush1.bf16.msra.mxu0 0
  %1078 = vmatprep.subr.bf16.mxu0 0
  %1079 = vmatpush1.bf16.msra.mxu0 0
  %1080 = vmatprep.subr.bf16.mxu0 0
  %1081 = vmatpush1.bf16.msra.mxu0 0
  %1082 = vmatprep.subr.bf16.mxu0 0
  %1083 = vmatpush1.bf16.msra.mxu0 0
  %1084 = vmatprep.subr.bf16.mxu0 0
  %1085 = vmatpush1.bf16.msra.mxu0 0
  %1086 = vmatprep.subr.bf16.mxu0 0
  %1087 = vmatpush1.bf16.msra.mxu0 0
  %1088 = vmatprep.subr.bf16.mxu0 0
  %1089 = vmatpush1.bf16.msra.mxu0 0
  %1090 = vmatprep.subr.bf16.mxu0 0
  %1091 = vmatpush1.bf16.msra.mxu0 0
  %1092 = vmatprep.mubr.bf16.mxu0 0
  %1093 = vmatmul.mubr.bf16.gmra.mrb[0].mxu0 %v648
  %v1094 = vpop.f32.mrb[0].mxu0
  %v1095 = vadd.f32 %v382, %v1094
  %v1096 = vpop.f32.mrb[0].mxu0
  %v1097 = vadd.f32 %v386, %v1096
  %v1098 = vpop.f32.mrb[0].mxu0
  %v1099 = vpop.f32.mrb[0].mxu0
  %1100 = vdwg.mxu0
  %1101 = vmatprep.subr.bf16.mxu0 0
  %1102 = vmatpush1.bf16.msra.mxu0 %v576
  %1103 = vmatprep.subr.bf16.mxu0 0
  %1104 = vmatpush1.bf16.msra.mxu0 %v599
  %1105 = vmatprep.subr.bf16.mxu0 0
  %1106 = vmatpush1.bf16.msra.mxu0 0
  %1107 = vmatprep.subr.bf16.mxu0 0
  %1108 = vmatpush1.bf16.msra.mxu0 0
  %1109 = vmatprep.subr.bf16.mxu0 0
  %1110 = vmatpush1.bf16.msra.mxu0 0
  %1111 = vmatprep.subr.bf16.mxu0 0
  %1112 = vmatpush1.bf16.msra.mxu0 0
  %1113 = vmatprep.subr.bf16.mxu0 0
  %1114 = vmatpush1.bf16.msra.mxu0 0
  %1115 = vmatprep.subr.bf16.mxu0 0
  %1116 = vmatpush1.bf16.msra.mxu0 0
  %1117 = vmatprep.subr.bf16.mxu0 0
  %1118 = vmatpush1.bf16.msra.mxu0 0
  %1119 = vmatprep.subr.bf16.mxu0 0
  %1120 = vmatpush1.bf16.msra.mxu0 0
  %1121 = vmatprep.subr.bf16.mxu0 0
  %1122 = vmatpush1.bf16.msra.mxu0 0
  %1123 = vmatprep.subr.bf16.mxu0 0
  %1124 = vmatpush1.bf16.msra.mxu0 0
  %1125 = vmatprep.subr.bf16.mxu0 0
  %1126 = vmatpush1.bf16.msra.mxu0 0
  %1127 = vmatprep.subr.bf16.mxu0 0
  %1128 = vmatpush1.bf16.msra.mxu0 0
  %1129 = vmatprep.subr.bf16.mxu0 0
  %1130 = vmatpush1.bf16.msra.mxu0 0
  %1131 = vmatprep.subr.bf16.mxu0 0
  %1132 = vmatpush1.bf16.msra.mxu0 0
  %1133 = vmatprep.mubr.bf16.mxu0 0
  %1134 = vmatmul.mubr.bf16.gmra.mrb[0].mxu0 %v648
  %v1135 = vpop.f32.mrb[0].mxu0
  %v1136 = vadd.f32 %v390, %v1135
  %v1137 = vpop.f32.mrb[0].mxu0
  %v1138 = vpop.f32.mrb[0].mxu0
  %v1139 = vpop.f32.mrb[0].mxu0
  %1140 = vdwg.mxu0
  %v1141 = vxor.u32 %v810, 2147483648
  %v1142 = vxor.u32 %v849, 2147483648
  %v1143 = vxor.u32 %v851, 2147483648
  %v1144 = vxor.u32 %v890, 2147483648
  %v1145 = vxor.u32 %v892, 2147483648
  %v1146 = vxor.u32 %v931, 2147483648
  %v1147 = vxor.u32 %v933, 2147483648
  %v1148 = vxor.u32 %v972, 2147483648
  %v1149 = vxor.u32 %v974, 2147483648
  %v1150 = vxor.u32 %v1013, 2147483648
  %v1151 = vxor.u32 %v1015, 2147483648
  %v1152 = vxor.u32 %v1054, 2147483648
  %v1153 = vxor.u32 %v1056, 2147483648
  %v1154 = vxor.u32 %v1095, 2147483648
  %v1155 = vxor.u32 %v1097, 2147483648
  %v1156 = vxor.u32 %v1136, 2147483648
  %v1157 = vmul.f32 %v1141, 1.442695
  %v1158 = vpow.pop %v1157
  %v1159 = vmul.f32 %v1142, 1.442695
  %v1160 = vpow.pop %v1159
  %v1161 = vmul.f32 %v1143, 1.442695
  %v1162 = vpow.pop %v1161
  %v1163 = vmul.f32 %v1144, 1.442695
  %v1164 = vpow.pop %v1163
  %v1165 = vmul.f32 %v1145, 1.442695
  %v1166 = vpow.pop %v1165
  %v1167 = vmul.f32 %v1146, 1.442695
  %v1168 = vpow.pop %v1167
  %v1169 = vmul.f32 %v1147, 1.442695
  %v1170 = vpow.pop %v1169
  %v1171 = vmul.f32 %v1148, 1.442695
  %v1172 = vpow.pop %v1171
  %v1173 = vmul.f32 %v1149, 1.442695
  %v1174 = vpow.pop %v1173
  %v1175 = vmul.f32 %v1150, 1.442695
  %v1176 = vpow.pop %v1175
  %v1177 = vmul.f32 %v1151, 1.442695
  %v1178 = vpow.pop %v1177
  %v1179 = vmul.f32 %v1152, 1.442695
  %v1180 = vpow.pop %v1179
  %v1181 = vmul.f32 %v1153, 1.442695
  %v1182 = vpow.pop %v1181
  %v1183 = vmul.f32 %v1154, 1.442695
  %v1184 = vpow.pop %v1183
  %v1185 = vmul.f32 %v1155, 1.442695
  %v1186 = vpow.pop %v1185
  %v1187 = vmul.f32 %v1156, 1.442695
  %v1188 = vpow.pop %v1187
  %v1189 = vadd.f32 %v1158, 1.0
  %v1190 = vadd.f32 %v1160, 1.0
  %v1191 = vadd.f32 %v1162, 1.0
  %v1192 = vadd.f32 %v1164, 1.0
  %v1193 = vadd.f32 %v1166, 1.0
  %v1194 = vadd.f32 %v1168, 1.0
  %v1195 = vadd.f32 %v1170, 1.0
  %v1196 = vadd.f32 %v1172, 1.0
  %v1197 = vadd.f32 %v1174, 1.0
  %v1198 = vadd.f32 %v1176, 1.0
  %v1199 = vadd.f32 %v1178, 1.0
  %v1200 = vadd.f32 %v1180, 1.0
  %v1201 = vadd.f32 %v1182, 1.0
  %v1202 = vadd.f32 %v1184, 1.0
  %v1203 = vadd.f32 %v1186, 1.0
  %v1204 = vadd.f32 %v1188, 1.0
  %v1205 = vrcp.pop %v1189
  %v1206 = vmul.f32 1.0, %v1205
  %v1207 = vrcp.pop %v1190
  %v1208 = vmul.f32 1.0, %v1207
  %v1209 = vrcp.pop %v1191
  %v1210 = vmul.f32 1.0, %v1209
  %v1211 = vrcp.pop %v1192
  %v1212 = vmul.f32 1.0, %v1211
  %v1213 = vrcp.pop %v1193
  %v1214 = vmul.f32 1.0, %v1213
  %v1215 = vrcp.pop %v1194
  %v1216 = vmul.f32 1.0, %v1215
  %v1217 = vrcp.pop %v1195
  %v1218 = vmul.f32 1.0, %v1217
  %v1219 = vrcp.pop %v1196
  %v1220 = vmul.f32 1.0, %v1219
  %v1221 = vrcp.pop %v1197
  %v1222 = vmul.f32 1.0, %v1221
  %v1223 = vrcp.pop %v1198
  %v1224 = vmul.f32 1.0, %v1223
  %v1225 = vrcp.pop %v1199
  %v1226 = vmul.f32 1.0, %v1225
  %v1227 = vrcp.pop %v1200
  %v1228 = vmul.f32 1.0, %v1227
  %v1229 = vrcp.pop %v1201
  %v1230 = vmul.f32 1.0, %v1229
  %v1231 = vrcp.pop %v1202
  %v1232 = vmul.f32 1.0, %v1231
  %v1233 = vrcp.pop %v1203
  %v1234 = vmul.f32 1.0, %v1233
  %v1235 = vrcp.pop %v1204
  %v1236 = vmul.f32 1.0, %v1235
  %v1237 = vld [vmem:[%s2] sm:$0xff]
  %v1238 = vpack.c.bf16 %v1237, %v1237
  %v1239 = vld [vmem:[%s7] sm:$0xff]
  %v1240 = vld [vmem:[%s7 + $0x8] sm:$0xff]
  %v1241 = vld [vmem:[%s7 + $0x10] sm:$0xff]
  %v1242 = vld [vmem:[%s8] sm:$0x3f]
  %v1244 = vlaneseq
  %v1245 = vshrl.u32 %v1244, 7
  %v1246 = vsub.s32 0, %v1245
  %v1247 = vrot.slane %v1242, %v1246
  %v1248 = vlaneseq
  %v1249 = vshrl.u32 %v1248, 7
  %v1250 = vsub.s32 1, %v1249
  %v1251 = vrot.slane %v1242, %v1250
  %v1252 = vlaneseq
  %v1253 = vshrl.u32 %v1252, 7
  %v1254 = vsub.s32 2, %v1253
  %v1255 = vrot.slane %v1242, %v1254
  %v1256 = vlaneseq
  %v1257 = vshrl.u32 %v1256, 7
  %v1258 = vsub.s32 3, %v1257
  %v1259 = vrot.slane %v1242, %v1258
  %v1260 = vlaneseq
  %v1261 = vshrl.u32 %v1260, 7
  %v1262 = vsub.s32 4, %v1261
  %v1263 = vrot.slane %v1242, %v1262
  %v1264 = vlaneseq
  %v1265 = vshrl.u32 %v1264, 7
  %v1266 = vsub.s32 5, %v1265
  %v1267 = vrot.slane %v1242, %v1266
  %v1277 = vunpack.c.l.b16 %v1239
  %v1278 = vunpack.c.h.b16 %v1239
  %v1279 = vunpack.c.l.b16 %v1240
  %v1280 = vunpack.c.h.b16 %v1240
  %v1281 = vunpack.c.l.b16 %v1241
  %v1282 = vunpack.c.h.b16 %v1241
  %v1283 = vpack.c.b16 %v1277, %v1277
  %v1284 = vpack.c.b16 %v1278, %v1278
  %v1285 = vpack.c.b16 %v1279, %v1279
  %v1286 = vpack.c.b16 %v1280, %v1280
  %v1287 = vpack.c.b16 %v1281, %v1281
  %v1288 = vpack.c.b16 %v1282, %v1282
  %vm1289 = vcmask 64512
  %v1291 = vsel %vm1289, %v1238, 0
  %vm1293 = vcmask 1043456
  %v1295 = vsel %vm1293, %v1283, 0
  %v1298 = vsel %vm1293, %v1284, 0
  %v1301 = vsel %vm1293, %v1285, 0
  %v1304 = vsel %vm1293, %v1286, 0
  %v1307 = vsel %vm1293, %v1287, 0
  %v1310 = vsel %vm1293, %v1288, 0
  %1312 = vmatprep.subr.bf16.mxu0 %v1298
  %1313 = vmatpush1.bf16.msra.mxu0 %v1295
  %1314 = vmatprep.subr.bf16.mxu0 0
  %1315 = vmatpush1.bf16.msra.mxu0 0
  %1316 = vmatprep.subr.bf16.mxu0 0
  %1317 = vmatpush1.bf16.msra.mxu0 0
  %1318 = vmatprep.subr.bf16.mxu0 0
  %1319 = vmatpush1.bf16.msra.mxu0 0
  %1320 = vmatprep.subr.bf16.mxu0 0
  %1321 = vmatpush1.bf16.msra.mxu0 0
  %1322 = vmatprep.subr.bf16.mxu0 0
  %1323 = vmatpush1.bf16.msra.mxu0 0
  %1324 = vmatprep.subr.bf16.mxu0 0
  %1325 = vmatpush1.bf16.msra.mxu0 0
  %1326 = vmatprep.subr.bf16.mxu0 0
  %1327 = vmatpush1.bf16.msra.mxu0 0
  %1328 = vmatprep.subr.bf16.mxu0 0
  %1329 = vmatpush1.bf16.msra.mxu0 0
  %1330 = vmatprep.subr.bf16.mxu0 0
  %1331 = vmatpush1.bf16.msra.mxu0 0
  %1332 = vmatprep.subr.bf16.mxu0 0
  %1333 = vmatpush1.bf16.msra.mxu0 0
  %1334 = vmatprep.subr.bf16.mxu0 0
  %1335 = vmatpush1.bf16.msra.mxu0 0
  %1336 = vmatprep.subr.bf16.mxu0 0
  %1337 = vmatpush1.bf16.msra.mxu0 0
  %1338 = vmatprep.subr.bf16.mxu0 0
  %1339 = vmatpush1.bf16.msra.mxu0 0
  %1340 = vmatprep.subr.bf16.mxu0 0
  %1341 = vmatpush1.bf16.msra.mxu0 0
  %1342 = vmatprep.subr.bf16.mxu0 0
  %1343 = vmatpush1.bf16.msra.mxu0 0
  %1344 = vmatprep.mubr.bf16.mxu0 0
  %1345 = vmatmul.mubr.bf16.gmra.mrb[0].mxu0 %v1291
  %v1346 = vpop.f32.mrb[0].mxu0
  %v1347 = vadd.f32 %v1247, %v1346
  %v1348 = vpop.f32.mrb[0].mxu0
  %v1349 = vadd.f32 %v1251, %v1348
  %v1350 = vpop.f32.mrb[0].mxu0
  %v1351 = vpop.f32.mrb[0].mxu0
  %1352 = vdwg.mxu0
  %1353 = vmatprep.subr.bf16.mxu0 %v1304
  %1354 = vmatpush1.bf16.msra.mxu0 %v1301
  %1355 = vmatprep.subr.bf16.mxu0 0
  %1356 = vmatpush1.bf16.msra.mxu0 0
  %1357 = vmatprep.subr.bf16.mxu0 0
  %1358 = vmatpush1.bf16.msra.mxu0 0
  %1359 = vmatprep.subr.bf16.mxu0 0
  %1360 = vmatpush1.bf16.msra.mxu0 0
  %1361 = vmatprep.subr.bf16.mxu0 0
  %1362 = vmatpush1.bf16.msra.mxu0 0
  %1363 = vmatprep.subr.bf16.mxu0 0
  %1364 = vmatpush1.bf16.msra.mxu0 0
  %1365 = vmatprep.subr.bf16.mxu0 0
  %1366 = vmatpush1.bf16.msra.mxu0 0
  %1367 = vmatprep.subr.bf16.mxu0 0
  %1368 = vmatpush1.bf16.msra.mxu0 0
  %1369 = vmatprep.subr.bf16.mxu0 0
  %1370 = vmatpush1.bf16.msra.mxu0 0
  %1371 = vmatprep.subr.bf16.mxu0 0
  %1372 = vmatpush1.bf16.msra.mxu0 0
  %1373 = vmatprep.subr.bf16.mxu0 0
  %1374 = vmatpush1.bf16.msra.mxu0 0
  %1375 = vmatprep.subr.bf16.mxu0 0
  %1376 = vmatpush1.bf16.msra.mxu0 0
  %1377 = vmatprep.subr.bf16.mxu0 0
  %1378 = vmatpush1.bf16.msra.mxu0 0
  %1379 = vmatprep.subr.bf16.mxu0 0
  %1380 = vmatpush1.bf16.msra.mxu0 0
  %1381 = vmatprep.subr.bf16.mxu0 0
  %1382 = vmatpush1.bf16.msra.mxu0 0
  %1383 = vmatprep.subr.bf16.mxu0 0
  %1384 = vmatpush1.bf16.msra.mxu0 0
  %1385 = vmatprep.mubr.bf16.mxu0 0
  %1386 = vmatmul.mubr.bf16.gmra.mrb[0].mxu0 %v1291
  %v1387 = vpop.f32.mrb[0].mxu0
  %v1388 = vadd.f32 %v1255, %v1387
  %v1389 = vpop.f32.mrb[0].mxu0
  %v1390 = vadd.f32 %v1259, %v1389
  %v1391 = vpop.f32.mrb[0].mxu0
  %v1392 = vpop.f32.mrb[0].mxu0
  %1393 = vdwg.mxu0
  %1394 = vmatprep.subr.bf16.mxu0 %v1310
  %1395 = vmatpush1.bf16.msra.mxu0 %v1307
  %1396 = vmatprep.subr.bf16.mxu0 0
  %1397 = vmatpush1.bf16.msra.mxu0 0
  %1398 = vmatprep.subr.bf16.mxu0 0
  %1399 = vmatpush1.bf16.msra.mxu0 0
  %1400 = vmatprep.subr.bf16.mxu0 0
  %1401 = vmatpush1.bf16.msra.mxu0 0
  %1402 = vmatprep.subr.bf16.mxu0 0
  %1403 = vmatpush1.bf16.msra.mxu0 0
  %1404 = vmatprep.subr.bf16.mxu0 0
  %1405 = vmatpush1.bf16.msra.mxu0 0
  %1406 = vmatprep.subr.bf16.mxu0 0
  %1407 = vmatpush1.bf16.msra.mxu0 0
  %1408 = vmatprep.subr.bf16.mxu0 0
  %1409 = vmatpush1.bf16.msra.mxu0 0
  %1410 = vmatprep.subr.bf16.mxu0 0
  %1411 = vmatpush1.bf16.msra.mxu0 0
  %1412 = vmatprep.subr.bf16.mxu0 0
  %1413 = vmatpush1.bf16.msra.mxu0 0
  %1414 = vmatprep.subr.bf16.mxu0 0
  %1415 = vmatpush1.bf16.msra.mxu0 0
  %1416 = vmatprep.subr.bf16.mxu0 0
  %1417 = vmatpush1.bf16.msra.mxu0 0
  %1418 = vmatprep.subr.bf16.mxu0 0
  %1419 = vmatpush1.bf16.msra.mxu0 0
  %1420 = vmatprep.subr.bf16.mxu0 0
  %1421 = vmatpush1.bf16.msra.mxu0 0
  %1422 = vmatprep.subr.bf16.mxu0 0
  %1423 = vmatpush1.bf16.msra.mxu0 0
  %1424 = vmatprep.subr.bf16.mxu0 0
  %1425 = vmatpush1.bf16.msra.mxu0 0
  %1426 = vmatprep.mubr.bf16.mxu0 0
  %1427 = vmatmul.mubr.bf16.gmra.mrb[0].mxu0 %v1291
  %v1428 = vpop.f32.mrb[0].mxu0
  %v1429 = vadd.f32 %v1263, %v1428
  %v1430 = vpop.f32.mrb[0].mxu0
  %v1431 = vadd.f32 %v1267, %v1430
  %v1432 = vpop.f32.mrb[0].mxu0
  %v1433 = vpop.f32.mrb[0].mxu0
  %1434 = vdwg.mxu0
  %v1435 = vxor.u32 %v1347, 2147483648
  %v1436 = vxor.u32 %v1349, 2147483648
  %v1437 = vxor.u32 %v1388, 2147483648
  %v1438 = vxor.u32 %v1390, 2147483648
  %v1439 = vxor.u32 %v1429, 2147483648
  %v1440 = vxor.u32 %v1431, 2147483648
  %v1441 = vmul.f32 %v1435, 1.442695
  %v1442 = vpow.pop %v1441
  %v1443 = vmul.f32 %v1436, 1.442695
  %v1444 = vpow.pop %v1443
  %v1445 = vmul.f32 %v1437, 1.442695
  %v1446 = vpow.pop %v1445
  %v1447 = vmul.f32 %v1438, 1.442695
  %v1448 = vpow.pop %v1447
  %v1449 = vmul.f32 %v1439, 1.442695
  %v1450 = vpow.pop %v1449
  %v1451 = vmul.f32 %v1440, 1.442695
  %v1452 = vpow.pop %v1451
  %v1453 = vadd.f32 %v1442, 1.0
  %v1454 = vadd.f32 %v1444, 1.0
  %v1455 = vadd.f32 %v1446, 1.0
  %v1456 = vadd.f32 %v1448, 1.0
  %v1457 = vadd.f32 %v1450, 1.0
  %v1458 = vadd.f32 %v1452, 1.0
  %v1459 = vrcp.pop %v1453
  %v1460 = vmul.f32 1.0, %v1459
  %v1461 = vrcp.pop %v1454
  %v1462 = vmul.f32 1.0, %v1461
  %v1463 = vrcp.pop %v1455
  %v1464 = vmul.f32 1.0, %v1463
  %v1465 = vrcp.pop %v1456
  %v1466 = vmul.f32 1.0, %v1465
  %v1467 = vrcp.pop %v1457
  %v1468 = vmul.f32 1.0, %v1467
  %v1469 = vrcp.pop %v1458
  %v1470 = vmul.f32 1.0, %v1469
  %v1471 = vmax.f32 %v687, 0.0
  %vm1472 = vcmp.ne.f32.partialorder %v687, %v687
  %v1473 = vadd.f32 %v687, 0.0
  %v1474 = vand.u32 2147483647, %v687
  %v1475 = vsub.f32 0.0, %v1474
  %v1476 = vmul.f32 %v1475, 1.442695
  %v1477 = vpow.pop %v1476
  %v1478 = vadd.f32 %v1477, 1.0
  %v1479 = vlog2.pop %v1478
  %v1480 = vmul.f32 %v1479, 0.6931472
  %v1481 = vmul.f32 -0.5, %v1477
  %v1482 = vadd.f32 %v1481, 1.0
  %v1483 = vmul.f32 %v1482, %v1477
  %v1484 = vand.u32 2147483647, %v1477
  %vm1485 = vcmp.lt.f32.partialorder %v1484, 0.0004427343
  %v1486 = vsel %vm1485, %v1483, %v1480
  %v1487 = vadd.f32 %v1471, %v1486
  %v1488 = vsel %vm1472, %v1473, %v1487
  %v1489 = vadd.f32 %v1488, 0.0001
  %v1490 = vmax.f32 %v728, 0.0
  %vm1491 = vcmp.ne.f32.partialorder %v728, %v728
  %v1492 = vadd.f32 %v728, 0.0
  %v1493 = vand.u32 2147483647, %v728
  %v1494 = vsub.f32 0.0, %v1493
  %v1495 = vmul.f32 %v1494, 1.442695
  %v1496 = vpow.pop %v1495
  %v1497 = vadd.f32 %v1496, 1.0
  %v1498 = vlog2.pop %v1497
  %v1499 = vmul.f32 %v1498, 0.6931472
  %v1500 = vmul.f32 -0.5, %v1496
  %v1501 = vadd.f32 %v1500, 1.0
  %v1502 = vmul.f32 %v1501, %v1496
  %v1503 = vand.u32 2147483647, %v1496
  %vm1504 = vcmp.lt.f32.partialorder %v1503, 0.0004427343
  %v1505 = vsel %vm1504, %v1502, %v1499
  %v1506 = vadd.f32 %v1490, %v1505
  %v1507 = vsel %vm1491, %v1492, %v1506
  %v1508 = vadd.f32 %v1507, 0.0001
  %v1509 = vmax.f32 %v769, 0.0
  %vm1510 = vcmp.ne.f32.partialorder %v769, %v769
  %v1511 = vadd.f32 %v769, 0.0
  %v1512 = vand.u32 2147483647, %v769
  %v1513 = vsub.f32 0.0, %v1512
  %v1514 = vmul.f32 %v1513, 1.442695
  %v1515 = vpow.pop %v1514
  %v1516 = vadd.f32 %v1515, 1.0
  %v1517 = vlog2.pop %v1516
  %v1518 = vmul.f32 %v1517, 0.6931472
  %v1519 = vmul.f32 -0.5, %v1515
  %v1520 = vadd.f32 %v1519, 1.0
  %v1521 = vmul.f32 %v1520, %v1515
  %v1522 = vand.u32 2147483647, %v1515
  %vm1523 = vcmp.lt.f32.partialorder %v1522, 0.0004427343
  %v1524 = vsel %vm1523, %v1521, %v1518
  %v1525 = vadd.f32 %v1509, %v1524
  %v1526 = vsel %vm1510, %v1511, %v1525
  %v1527 = vadd.f32 %v1526, 0.0001
  %v1528 = vxor.u32 %v808, 2147483648
  %v1529 = vmul.f32 %v1528, 1.442695
  %v1530 = vpow.pop %v1529
  %v1531 = vadd.f32 %v1530, 1.0
  %v1532 = vrcp.pop %v1531
  %v1533 = vmul.f32 1.0, %v1532
  %v1534 = vsub.f32 0.0, %v808
  %v1535 = vmax.f32 %v1534, 0.0
  %vm1536 = vcmp.ne.f32.partialorder %v1534, %v1534
  %v1537 = vadd.f32 %v1534, 0.0
  %v1538 = vand.u32 2147483647, %v1534
  %v1539 = vsub.f32 0.0, %v1538
  %v1540 = vmul.f32 %v1539, 1.442695
  %v1541 = vpow.pop %v1540
  %v1542 = vadd.f32 %v1541, 1.0
  %v1543 = vlog2.pop %v1542
  %v1544 = vmul.f32 %v1543, 0.6931472
  %v1545 = vmul.f32 -0.5, %v1541
  %v1546 = vadd.f32 %v1545, 1.0
  %v1547 = vmul.f32 %v1546, %v1541
  %v1548 = vand.u32 2147483647, %v1541
  %vm1549 = vcmp.lt.f32.partialorder %v1548, 0.0004427343
  %v1550 = vsel %vm1549, %v1547, %v1544
  %v1551 = vadd.f32 %v1535, %v1550
  %v1552 = vsel %vm1536, %v1537, %v1551
  %v1553 = vsub.f32 0.0, %v1552
  %v1554 = vsub.f32 0.0, %v1534
  %v1555 = vmax.f32 %v1554, 0.0
  %vm1556 = vcmp.ne.f32.partialorder %v1554, %v1554
  %v1557 = vadd.f32 %v1554, 0.0
  %v1558 = vand.u32 2147483647, %v1554
  %v1559 = vsub.f32 0.0, %v1558
  %v1560 = vmul.f32 %v1559, 1.442695
  %v1561 = vpow.pop %v1560
  %v1562 = vadd.f32 %v1561, 1.0
  %v1563 = vlog2.pop %v1562
  %v1564 = vmul.f32 %v1563, 0.6931472
  %v1565 = vmul.f32 -0.5, %v1561
  %v1566 = vadd.f32 %v1565, 1.0
  %v1567 = vmul.f32 %v1566, %v1561
  %v1568 = vand.u32 2147483647, %v1561
  %vm1569 = vcmp.lt.f32.partialorder %v1568, 0.0004427343
  %v1570 = vsel %vm1569, %v1567, %v1564
  %v1571 = vadd.f32 %v1555, %v1570
  %v1572 = vsel %vm1556, %v1557, %v1571
  %v1573 = vsub.f32 0.0, %v1572
  %v1574 = vsub.f32 %v1553, -4.6051702
  %v1575 = vmul.f32 %v1533, %v1574
  %v1576 = vsub.f32 1.0, %v1533
  %v1577 = vsub.f32 %v1573, -0.010050336
  %v1578 = vmul.f32 %v1576, %v1577
  %v1579 = vadd.f32 %v1575, %v1578
  %v1580 = vmul.f32 %v685, %v685
  %v1581 = vmul.f32 %v1489, %v1489
  %v1582 = vadd.f32 %v1580, %v1581
  %v1583 = vsub.f32 %v1582, 1.0
  %v1584 = vmul.f32 %v1583, 0.5
  %v1585 = vlog2.pop %v1489
  %v1586 = vmul.f32 %v1585, 0.6931472
  %v1587 = vsub.f32 %v1584, %v1586
  %vm1588 = vcmask 130048
  %v1589 = vsel %vm1588, %v1587, 0.0
  %1590 = vadd.xlane.f32.xlu0 %v1589
  %v1591 = vpop.xlane.xlu0 %1590
  %v1592 = vmul.f32 %v726, %v726
  %v1593 = vmul.f32 %v1508, %v1508
  %v1594 = vadd.f32 %v1592, %v1593
  %v1595 = vsub.f32 %v1594, 1.0
  %v1596 = vmul.f32 %v1595, 0.5
  %v1597 = vlog2.pop %v1508
  %v1598 = vmul.f32 %v1597, 0.6931472
  %v1599 = vsub.f32 %v1596, %v1598
  %v1600 = vsel %vm1289, %v1599, 0.0
  %1601 = vadd.xlane.f32.xlu0 %v1600
  %v1602 = vpop.xlane.xlu0 %1601
  %v1603 = vmul.f32 %v767, %v767
  %v1604 = vmul.f32 %v1527, %v1527
  %v1605 = vadd.f32 %v1603, %v1604
  %v1606 = vsub.f32 %v1605, 1.0
  %v1607 = vmul.f32 %v1606, 0.5
  %v1608 = vlog2.pop %v1527
  %v1609 = vmul.f32 %v1608, 0.6931472
  %v1610 = vsub.f32 %v1607, %v1609
  %vm1611 = vcmask 15360
  %v1612 = vsel %vm1611, %v1610, 0.0
  %1613 = vadd.xlane.f32.xlu0 %v1612
  %v1614 = vpop.xlane.xlu0 %1613
  %v1615 = vsel %vm1611, %v1579, 0.0
  %1616 = vadd.xlane.f32.xlu0 %v1615
  %v1617 = vpop.xlane.xlu0 %1616
  %vm1618 = vcmp.gt.f32.partialorder %v1533, 0.7
  %v1619 = vsel %vm1618, 1, 0
  %v1620 = vcvt.s32.f32 %v1619
  %v1621 = vsel %vm1611, %v1620, 0.0
  %1622 = vadd.xlane.f32.xlu0 %v1621
  %v1623 = vpop.xlane.xlu0 %1622
  %1625 = vset.pattern.permute.xlu0 0
  %1626 = vperm.xlu0 %1625, %v1533
  %v1627 = vpop.permute.xlu0 %1626
  %v1629 = vmul.f32 %v1218, %v1627
  %v1630 = vmul.f32 %v1220, %v1627
  %v1631 = vsub.f32 0.0, %v767
  %v1632 = vxor.u32 %v1631, 2147483648
  %v1633 = vmul.f32 %v1632, 1.442695
  %v1634 = vpow.pop %v1633
  %v1635 = vadd.f32 %v1634, 1.0
  %v1636 = vrcp.pop %v1635
  %v1637 = vmul.f32 1.0, %v1636
  %1639 = vset.pattern.permute.xlu0 0
  %1640 = vperm.xlu0 %1639, %v1637
  %v1641 = vpop.permute.xlu0 %1640
  %v1643 = vmul.f32 %v1629, %v1641
  %v1644 = vmul.f32 %v1630, %v1641
  %v1645 = vadd.f32 %v1629, 0.0
  %v1646 = vadd.f32 %v1630, 0.0
  %v1647 = vadd.f32 %v1643, 0.0
  %v1648 = vadd.f32 %v1644, 0.0
  %1649 = vset.pattern.permute.xlu0 1
  %1650 = vperm.xlu0 %1649, %v1533
  %v1651 = vpop.permute.xlu0 %1650
  %v1653 = vmul.f32 %v1234, %v1651
  %v1654 = vmul.f32 %v1236, %v1651
  %1655 = vset.pattern.permute.xlu0 1
  %1656 = vperm.xlu0 %1655, %v1637
  %v1657 = vpop.permute.xlu0 %1656
  %v1659 = vmul.f32 %v1653, %v1657
  %v1660 = vmul.f32 %v1654, %v1657
  %v1661 = vadd.f32 %v1645, %v1653
  %v1662 = vadd.f32 %v1646, %v1654
  %v1663 = vadd.f32 %v1647, %v1659
  %v1664 = vadd.f32 %v1648, %v1660
  %v1665 = vadd.f32 %v1663, 1e-15
  %v1666 = vadd.f32 %v1664, 1e-15
  %v1667 = vrcp.pop %v1665
  %v1668 = vmul.f32 1.0, %v1667
  %v1669 = vrcp.pop %v1666
  %v1670 = vmul.f32 1.0, %v1669
  %v1671 = vmax.f32 %v1661, 1e-15
  %v1672 = vmax.f32 %v1662, 1e-15
  %v1673 = vmin.f32 %v1671, 1.0
  %v1674 = vmin.f32 %v1672, 1.0
  %v1675 = vsub.f32 1.0, %v1673
  %v1676 = vsub.f32 1.0, %v1674
  %v1677 = vmul.f32 %v1643, %v1668
  %v1678 = vmul.f32 %v1644, %v1670
  %v1679 = vmul.f32 %v1677, %v1627
  %v1680 = vmul.f32 %v1678, %v1627
  %v1681 = vmul.f32 %v1659, %v1668
  %v1682 = vmul.f32 %v1660, %v1670
  %v1683 = vmul.f32 %v1681, %v1651
  %v1684 = vmul.f32 %v1682, %v1651
  %v1685 = vmul.f32 %v1675, %v1460
  %v1686 = vmul.f32 %v1676, %v1462
  %v1687 = vmul.f32 %v1206, %v1679
  %v1688 = vmul.f32 %v1208, %v1680
  %v1689 = vadd.f32 %v1685, %v1687
  %v1690 = vadd.f32 %v1686, %v1688
  %v1691 = vmul.f32 %v1222, %v1683
  %v1692 = vmul.f32 %v1224, %v1684
  %v1693 = vadd.f32 %v1689, %v1691
  %v1694 = vadd.f32 %v1690, %v1692
  %1695 = vst [vmem:[%s9] sm:$0xff] %v1693
  %1696 = vst [vmem:[%s9 + $0x8] sm:$0xff] %v1694
  %v1697 = vld [vmem:[%s1] sm:$0xff]
  %v1698 = vld [vmem:[%s1 + $0x8] sm:$0xff]
  %v1699 = vsub.f32 %v1697, %v1693
  %v1700 = vsub.f32 %v1698, %v1694
  %v1701 = vmul.f32 %v1699, 10.0
  %v1702 = vmul.f32 %v1700, 10.0
  %v1703 = vmul.f32 %v1701, -0.5
  %v1704 = vmul.f32 %v1702, -0.5
  %v1705 = vmul.f32 %v1703, %v1701
  %v1706 = vmul.f32 %v1704, %v1702
  %v1707 = vadd.f32 %v1705, %v1706
  %1708 = vadd.xlane.f32.xlu0 %v1707
  %v1709 = vpop.xlane.xlu0 %1708
  %v1710 = vadd.f32 %v1709, 0.0
  %v1711 = vmul.f32 %v1675, %v1464
  %v1712 = vmul.f32 %v1676, %v1466
  %v1713 = vmul.f32 %v1210, %v1679
  %v1714 = vmul.f32 %v1212, %v1680
  %v1715 = vadd.f32 %v1711, %v1713
  %v1716 = vadd.f32 %v1712, %v1714
  %v1717 = vmul.f32 %v1226, %v1683
  %v1718 = vmul.f32 %v1228, %v1684
  %v1719 = vadd.f32 %v1715, %v1717
  %v1720 = vadd.f32 %v1716, %v1718
  %1721 = vst [vmem:[%s9 + $0x10] sm:$0xff] %v1719
  %1722 = vst [vmem:[%s9 + $0x18] sm:$0xff] %v1720
  %v1723 = vld [vmem:[%s1 + $0x10] sm:$0xff]
  %v1724 = vld [vmem:[%s1 + $0x18] sm:$0xff]
  %v1725 = vsub.f32 %v1723, %v1719
  %v1726 = vsub.f32 %v1724, %v1720
  %v1727 = vmul.f32 %v1725, 10.0
  %v1728 = vmul.f32 %v1726, 10.0
  %v1729 = vmul.f32 %v1727, -0.5
  %v1730 = vmul.f32 %v1728, -0.5
  %v1731 = vmul.f32 %v1729, %v1727
  %v1732 = vmul.f32 %v1730, %v1728
  %v1733 = vadd.f32 %v1731, %v1732
  %1734 = vadd.xlane.f32.xlu0 %v1733
  %v1735 = vpop.xlane.xlu0 %1734
  %v1736 = vadd.f32 %v1710, %v1735
  %v1737 = vmul.f32 %v1675, %v1468
  %v1738 = vmul.f32 %v1676, %v1470
  %v1739 = vmul.f32 %v1214, %v1679
  %v1740 = vmul.f32 %v1216, %v1680
  %v1741 = vadd.f32 %v1737, %v1739
  %v1742 = vadd.f32 %v1738, %v1740
  %v1743 = vmul.f32 %v1230, %v1683
  %v1744 = vmul.f32 %v1232, %v1684
  %v1745 = vadd.f32 %v1741, %v1743
  %v1746 = vadd.f32 %v1742, %v1744
  %1747 = vst [vmem:[%s9 + $0x20] sm:$0xff] %v1745
  %1748 = vst [vmem:[%s9 + $0x28] sm:$0xff] %v1746
  %v1749 = vld [vmem:[%s1 + $0x20] sm:$0xff]
  %v1750 = vld [vmem:[%s1 + $0x28] sm:$0xff]
  %v1751 = vsub.f32 %v1749, %v1745
  %v1752 = vsub.f32 %v1750, %v1746
  %v1753 = vmul.f32 %v1751, 10.0
  %v1754 = vmul.f32 %v1752, 10.0
  %v1755 = vmul.f32 %v1753, -0.5
  %v1756 = vmul.f32 %v1754, -0.5
  %v1757 = vmul.f32 %v1755, %v1753
  %v1758 = vmul.f32 %v1756, %v1754
  %v1759 = vadd.f32 %v1757, %v1758
  %1760 = vadd.xlane.f32.xlu0 %v1759
  %v1761 = vpop.xlane.xlu0 %1760
  %v1762 = vadd.f32 %v1736, %v1761
  %v1763 = vadd.f32 %v1762, 1062.6405
  %v1764 = vlaneseq
  %v1765 = vand.u32 %v1764, 127
  %vm1766 = vcmp.eq.s32.totalorder %v1765, 0
  %v1767 = vsel %vm1766, %v1763, 0.0
  %vm1768 = vcmp.eq.s32.totalorder %v1765, 1
  %v1769 = vsel %vm1768, %v1591, 0.0
  %v1770 = vadd.f32 %v1767, %v1769
  %vm1771 = vcmp.eq.s32.totalorder %v1765, 2
  %v1772 = vsel %vm1771, %v1602, 0.0
  %v1773 = vadd.f32 %v1770, %v1772
  %vm1774 = vcmp.eq.s32.totalorder %v1765, 3
  %v1775 = vsel %vm1774, %v1614, 0.0
  %v1776 = vadd.f32 %v1773, %v1775
  %vm1777 = vcmp.eq.s32.totalorder %v1765, 4
  %v1778 = vsel %vm1777, %v1617, 0.0
  %v1779 = vadd.f32 %v1776, %v1778
  %vm1780 = vcmp.eq.s32.totalorder %v1765, 5
  %v1781 = vsel %vm1780, %v1623, 0.0
  %v1782 = vadd.f32 %v1779, %v1781
  %1783 = vst [vmem:[%s10] sm:$0xff] %v1782
  // Predicated region
  $region38: #{scalor_forward.1} parent=0 // pred_check
    _
  $region39: #{scalor_forward.1} parent=0 // pred_check_branch
    %1785 = sbr.rel (0) target = $region41
  $region40: #{scalor_forward.1} parent=0 // pred_region
    _
  $region41: #{scalor_forward.1} parent=0 // pred_fallthru
    _
  // Predicated region
  $region42: #{scalor_forward.1} parent=0 // pred_check
    _
  $region43: #{scalor_forward.1} parent=0 // pred_check_branch
    %1787 = sbr.rel (0) target = $region45
  $region44: #{scalor_forward.1} parent=0 // pred_region
    _
  $region45: #{scalor_forward.1} parent=0 // pred_fallthru
    _
  // Predicated region
  $region46: #{scalor_forward.1} parent=0 // pred_check
    _
  $region47: #{scalor_forward.1} parent=0 // pred_check_branch
    %1789 = sbr.rel (0) target = $region49
  $region48: #{scalor_forward.1} parent=0 // pred_region
    _
  $region49: #{scalor_forward.1} parent=0 // pred_fallthru
    _
  // Predicated region
  $region50: #{scalor_forward.1} parent=0 // pred_check
    _
  $region51: #{scalor_forward.1} parent=0 // pred_check_branch
    %1791 = sbr.rel (0) target = $region53
  $region52: #{scalor_forward.1} parent=0 // pred_region
    _
  $region53: #{scalor_forward.1} parent=0 // pred_fallthru
    _

</llo_original>
